<compile_context>
chip_gen: v6e
topology: v6e:2x2x1
jax: 0.10.0
libtpu: 0.0.40
codegen_flags: <defaults>
</compile_context>

<pallas_src>
import jax
import jax.numpy as jnp
import numpy as np
from jax.experimental import pallas as pl
from jax.experimental.pallas import tpu as pltpu

# ---- constants fixed by the PyTorch module ----
ENCODE_LAYER = 12
FILTER_SIZES = [2, 2, 2]
HIDDEN_SIZE = 768
N_CLASS = 2
NUM_FILTERS = 3
NUM_FILTER_TOTAL = NUM_FILTERS * len(FILTER_SIZES)   # 9
KPAD = 128                                            # 9 filter channels padded to one lane register


# ---------------------------------------------------------------------------
# Pallas kernel: full TextCNN forward for a tile of bt batch elements
# ---------------------------------------------------------------------------
def _textcnn_kernel(x_ref, w_ref, bconv_ref, wlin_ref, blin_ref, o_ref, s_ref):
    # x_ref:   (12, bt, 768) bf16  layer-major CLS embeddings for one batch tile
    # w_ref:   (768, 256)    bf16  fused conv weights: lanes [0,128)=kernel row 0, [128,256)=row 1
    # bconv:   (1, 128)      f32   conv biases (zero padded)
    # wlin:    (128, 128)    f32   9->2 linear; rows >= 9 and cols >= 2 are zero
    # blin:    (1, 128)      f32   final bias; pad lanes hold -1e30 (class mask baked in)
    # o_ref:   (bt, 128)     f32   lane-dense softmax output (pad lanes -> 0)
    # s_ref:   (12*bt, 256)  f32   VMEM scratch: fused conv matmul result, layer-major rows
    L = ENCODE_LAYER
    bt = o_ref.shape[0]

    # One full-width MXU pass for all bt samples, all 12 layers, both conv kernel rows.
    # bt is a multiple of 16, so this bf16 leading-dim collapse is layout-preserving.
    x2d = x_ref[...].reshape(L * bt, HIDDEN_SIZE)
    s_ref[...] = jnp.dot(x2d, w_ref[...], preferred_element_type=jnp.float32)

    # Conv2d(kernel=(2, hidden)) == sliding add of the two kernel-row responses along the
    # 12 encoder layers, then MaxPool over the 11 valid time positions.  Layer-major rows
    # make each term a contiguous (bt, 128) slab -> 11 wide elementwise VPU ops.
    acc = s_ref[pl.ds(0, bt), pl.ds(0, KPAD)] + s_ref[pl.ds(bt, bt), pl.ds(KPAD, KPAD)]
    for t in range(1, L - 1):
        acc = jnp.maximum(
            acc,
            s_ref[pl.ds(t * bt, bt), pl.ds(0, KPAD)]
            + s_ref[pl.ds((t + 1) * bt, bt), pl.ds(KPAD, KPAD)],
        )

    # Per-filter bias + ReLU commute with the max (constant shift per lane, monotone).
    act = jnp.maximum(acc + bconv_ref[...], 0.0)                                   # (bt, 128)

    # Final linear (9 -> 2 on zero-padded lanes) + bias; pad lanes get -1e30 from blin so
    # they contribute exp(-inf)=0 to the softmax.
    logits = jnp.dot(act, wlin_ref[...], preferred_element_type=jnp.float32) + blin_ref[...]
    z = logits - jnp.max(logits, axis=-1, keepdims=True)
    e = jnp.exp(z)
    o_ref[...] = e / jnp.sum(e, axis=-1, keepdims=True)


def _pick_bt(B):
    # Multiple of 16 (bf16 sublane packing -> free in-kernel reshape), cap 128 (M = 1536
    # MXU rows per step), and sized ~ceil(B/2) so the grid has >= 2 batch tiles whenever
    # B allows it (v7x has 2 TensorCores to shard the "parallel" axis across).
    half = (B + 1) // 2
    bt = ((half + 15) // 16) * 16
    return max(16, min(128, bt))


def textcnn_pallas(cls_embeddings_lm, packed_params, *, bt=None):
    """cls_embeddings_lm: (12, B, 768) layer-major float -> (B, 2) softmax probs."""
    L, B, H = cls_embeddings_lm.shape
    assert L == ENCODE_LAYER and H == HIDDEN_SIZE
    w, bconv, wlin, blin = packed_params
    if bt is None:
        bt = _pick_bt(B)
    b_pad = ((B + bt - 1) // bt) * bt
    x = cls_embeddings_lm.astype(jnp.bfloat16)           # halve the dominant HBM stream
    if b_pad != B:
        x = jnp.pad(x, ((0, 0), (0, b_pad - B), (0, 0)))

    out = pl.pallas_call(
        _textcnn_kernel,
        out_shape=jax.ShapeDtypeStruct((b_pad, KPAD), jnp.float32),
        grid=(b_pad // bt,),
        in_specs=[
            pl.BlockSpec((ENCODE_LAYER, bt, HIDDEN_SIZE), lambda i: (0, i, 0)),
            pl.BlockSpec((HIDDEN_SIZE, 2 * KPAD), lambda i: (0, 0)),   # constant index -> resident
            pl.BlockSpec((1, KPAD), lambda i: (0, 0)),
            pl.BlockSpec((KPAD, KPAD), lambda i: (0, 0)),
            pl.BlockSpec((1, KPAD), lambda i: (0, 0)),
        ],
        out_specs=pl.BlockSpec((bt, KPAD), lambda i: (i, 0)),          # lane-dense 128-wide stores
        scratch_shapes=[pltpu.VMEM((ENCODE_LAYER * bt, 2 * KPAD), jnp.float32)],
        compiler_params=pltpu.CompilerParams(dimension_semantics=("parallel",)),
    )(x, w, bconv, wlin, blin)
    return out[:B, :N_CLASS]


# ---------------------------------------------------------------------------
# Deterministic parameter construction (module __init__ shapes)
# ---------------------------------------------------------------------------
def init_textcnn_params(key):
    keys = jax.random.split(key, 7)
    conv_ws, conv_bs = [], []
    fan_in = 1 * 2 * HIDDEN_SIZE
    bound = 1.0 / np.sqrt(fan_in)
    for i, size in enumerate(FILTER_SIZES):
        assert size == 2, "kernel is specialized to filter height 2 (as in the module)"
        conv_ws.append(jax.random.uniform(keys[i], (NUM_FILTERS, 1, size, HIDDEN_SIZE),
                                          jnp.float32, -bound, bound))
        conv_bs.append(jax.random.uniform(keys[3 + i], (NUM_FILTERS,), jnp.float32, -bound, bound))
    lb = 1.0 / np.sqrt(NUM_FILTER_TOTAL)
    lin_w = jax.random.uniform(keys[6], (N_CLASS, NUM_FILTER_TOTAL), jnp.float32, -lb, lb)
    lin_b = jnp.ones((N_CLASS,), jnp.float32)            # nn.Parameter(torch.ones([n_class]))

    # Pack into lane-padded, fused kernel operands.
    # NOTE: a v5e-only N=128 packing (row-1 filters in lanes 9..17 + pltpu.roll realign)
    # would halve its MXU passes; kept at N=256 here since v6e/v7x MXUs are 256 wide.
    w = jnp.zeros((HIDDEN_SIZE, 2 * KPAD), jnp.float32)     # [kernel row 0 | kernel row 1]
    bconv = jnp.zeros((1, KPAD), jnp.float32)
    wlin = jnp.zeros((KPAD, KPAD), jnp.float32)
    for c in range(len(FILTER_SIZES)):
        for f in range(NUM_FILTERS):
            j = c * NUM_FILTERS + f                          # matches torch.cat ordering
            w = w.at[:, j].set(conv_ws[c][f, 0, 0, :])
            w = w.at[:, KPAD + j].set(conv_ws[c][f, 0, 1, :])
            bconv = bconv.at[0, j].set(conv_bs[c][f])
            wlin = wlin.at[j, :N_CLASS].set(lin_w[:, j])
    # Class mask baked in: pad lanes -> -1e30 so softmax gives exactly 0 there.
    blin = jnp.full((1, KPAD), -1e30, jnp.float32).at[0, :N_CLASS].set(lin_b)
    packed = (w.astype(jnp.bfloat16), bconv, wlin, blin)
    raw = dict(conv_ws=conv_ws, conv_bs=conv_bs, lin_w=lin_w, lin_b=lin_b)
    return packed, raw


def init_bert_stub(key, vocab):
    k1, k2, k3, k4 = jax.random.split(key, 4)
    tok_emb = jax.random.normal(k1, (vocab, HIDDEN_SIZE), jnp.float32) * 0.02
    seg_emb = jax.random.normal(k2, (2, HIDDEN_SIZE), jnp.float32) * 0.02
    layer_scale = 1.0 + 0.1 * jax.random.normal(k3, (ENCODE_LAYER, HIDDEN_SIZE), jnp.float32)
    layer_shift = 0.1 * jax.random.normal(k4, (ENCODE_LAYER, HIDDEN_SIZE), jnp.float32)
    return tok_emb, seg_emb, layer_scale, layer_shift


def stub_cls_embeddings_lm(batch_seqs, batch_seq_masks, batch_seq_segments, bert_params):
    # TODO(synk): the pretrained `bert-base-uncased` encoder (AutoModel/AutoTokenizer) has no
    # in-script equivalent; replaced by a deterministic embedding stub that emits one CLS
    # embedding per encoder layer, stacked LAYER-MAJOR -> (12, B, 768) (free for the wrapper,
    # and exactly the layout the kernel's 3-D BlockSpec wants).
    tok_emb, seg_emb, layer_scale, layer_shift = bert_params
    cls0 = tok_emb[batch_seqs[:, 0]] + seg_emb[batch_seq_segments[:, 0]]
    cls0 = cls0 * batch_seq_masks[:, 0:1].astype(jnp.float32)
    return jnp.tanh(layer_scale[:, None, :] * cls0[None, :, :] + layer_shift[:, None, :])


def bert_blend_cnn_forward(batch_seqs, batch_seq_masks, batch_seq_segments, labels,
                           bert_params, cnn_packed):
    del labels  # unused in the PyTorch forward as well
    cls_lm = stub_cls_embeddings_lm(batch_seqs, batch_seq_masks, batch_seq_segments, bert_params)
    return textcnn_pallas(cls_lm, cnn_packed)


# ---------------------------------------------------------------------------
# Plain-JAX reference of the TextCNN math (bf16 conv operands to match the kernel)
# ---------------------------------------------------------------------------
def textcnn_ref(x_bm, raw):
    L = ENCODE_LAYER
    xb = x_bm.astype(jnp.bfloat16)
    parts = []
    for c, size in enumerate(FILTER_SIZES):
        W = raw["conv_ws"][c][:, 0].astype(jnp.bfloat16)     # (F, size, H)
        b = raw["conv_bs"][c]
        conv = jnp.zeros((x_bm.shape[0], NUM_FILTERS, L - size + 1), jnp.float32)
        for w in range(size):
            conv = conv + jnp.einsum("bth,fh->bft", xb[:, w:L - size + 1 + w, :], W[:, w, :],
                                     preferred_element_type=jnp.float32)
        h = jax.nn.relu(conv + b[None, :, None])
        parts.append(jnp.max(h, axis=2))                     # (B, F)
    hp = jnp.concatenate(parts, axis=1)                      # (B, 9)  same order as torch.cat
    logits = hp @ raw["lin_w"].T + raw["lin_b"]
    return jax.nn.softmax(logits, axis=-1)


if __name__ == "__main__":
    key = jax.random.PRNGKey(0)
    k_cnn, k_bert, k_ids, k_seg = jax.random.split(key, 4)

    B, S, VOCAB = 24, 8, 100                      # bt=16 -> grid of 2 batch tiles (+8 padded rows)
    batch_seqs = jax.random.randint(k_ids, (B, S), 0, VOCAB, dtype=jnp.int32)
    batch_seq_masks = jnp.ones((B, S), jnp.int32)
    batch_seq_segments = jax.random.randint(k_seg, (B, S), 0, 2, dtype=jnp.int32)
    labels = jnp.zeros((B,), jnp.int32)

    cnn_packed, cnn_raw = init_textcnn_params(k_cnn)
    bert_params = init_bert_stub(k_bert, VOCAB)

    probs = bert_blend_cnn_forward(batch_seqs, batch_seq_masks, batch_seq_segments,
                                   labels, bert_params, cnn_packed)
    probs = jax.block_until_ready(probs)
    assert probs.shape == (B, N_CLASS)

    # correctness check against the plain-JAX reference of the same math
    cls_lm = stub_cls_embeddings_lm(batch_seqs, batch_seq_masks, batch_seq_segments, bert_params)
    ref = textcnn_ref(jnp.transpose(cls_lm, (1, 0, 2)), cnn_raw)
    np.testing.assert_allclose(np.asarray(probs), np.asarray(ref), rtol=2e-3, atol=2e-3)

    print("KERNEL_OK")
</pallas_src>

<mosaic_0001>
module attributes {stable_mosaic.version = 11 : i64} {
  func.func @_textcnn_kernel(%arg0: i32, %arg1: memref<12x16x768xbf16, #tpu.memory_space<vmem>>, %arg2: memref<768x256xbf16, #tpu.memory_space<vmem>>, %arg3: memref<1x128xf32, #tpu.memory_space<vmem>>, %arg4: memref<128x128xf32, #tpu.memory_space<vmem>>, %arg5: memref<1x128xf32, #tpu.memory_space<vmem>>, %arg6: memref<16x128xf32, #tpu.memory_space<vmem>>, %arg7: memref<192x256xf32, #tpu.memory_space<vmem>>) attributes {dimension_semantics = [#tpu.dimension_semantics<parallel>], iteration_bounds = array<i64: 2>, scalar_prefetch = 0 : i64, scratch_operands = 1 : i64, tpu.core_type = #tpu.core_type<tc>, window_params = [{transform_indices = @transform_0, window_bounds = array<i64: 12, 16, 768>}, {pipeline_mode = #tpu.pipeline_mode<synchronous>, transform_indices = @transform_1, window_bounds = array<i64: 768, 256>}, {pipeline_mode = #tpu.pipeline_mode<synchronous>, transform_indices = @transform_2, window_bounds = array<i64: 1, 128>}, {pipeline_mode = #tpu.pipeline_mode<synchronous>, transform_indices = @transform_3, window_bounds = array<i64: 128, 128>}, {pipeline_mode = #tpu.pipeline_mode<synchronous>, transform_indices = @transform_4, window_bounds = array<i64: 1, 128>}, {transform_indices = @transform_5, window_bounds = array<i64: 16, 128>}]} {
    %c0 = arith.constant 0 : index
    %c0_0 = arith.constant 0 : index
    %c0_1 = arith.constant 0 : index
    %0 = vector.load %arg1[%c0, %c0_0, %c0_1] : memref<12x16x768xbf16, #tpu.memory_space<vmem>>, vector<12x16x768xbf16>
    %1 = vector.shape_cast %0 : vector<12x16x768xbf16> to vector<192x768xbf16>
    %c0_2 = arith.constant 0 : index
    %c0_3 = arith.constant 0 : index
    %2 = vector.load %arg2[%c0_2, %c0_3] : memref<768x256xbf16, #tpu.memory_space<vmem>>, vector<768x256xbf16>
    %cst = arith.constant dense<0.000000e+00> : vector<192x256xf32>
    %3 = tpu.matmul %1, %2, %cst {dimension_numbers = #tpu.dot_dimension_numbers<[1], [0], [0], [1], [0, 0, 1, 1], [], []>} : vector<192x768xbf16>, vector<768x256xbf16>, vector<192x256xf32> -> vector<192x256xf32>
    %c0_4 = arith.constant 0 : index
    %c0_5 = arith.constant 0 : index
    %4 = vector.load %arg7[%c0_4, %c0_5] : memref<192x256xf32, #tpu.memory_space<vmem>>, vector<192x256xf32>
    tpu.vector_store %arg7[%c0_4, %c0_5], %3 {strides = array<i32>} : memref<192x256xf32, #tpu.memory_space<vmem>>, vector<192x256xf32>,
    %c0_6 = arith.constant 0 : index
    %c0_7 = arith.constant 0 : index
    %5 = vector.load %arg7[%c0_6, %c0_7] : memref<192x256xf32, #tpu.memory_space<vmem>>, vector<16x128xf32>
    %c16 = arith.constant 16 : index
    %c128 = arith.constant 128 : index
    %6 = vector.load %arg7[%c16, %c128] : memref<192x256xf32, #tpu.memory_space<vmem>>, vector<16x128xf32>
    %7 = arith.addf %5, %6 : vector<16x128xf32>
    %c16_8 = arith.constant 16 : index
    %c0_9 = arith.constant 0 : index
    %8 = vector.load %arg7[%c16_8, %c0_9] : memref<192x256xf32, #tpu.memory_space<vmem>>, vector<16x128xf32>
    %c32 = arith.constant 32 : index
    %c128_10 = arith.constant 128 : index
    %9 = vector.load %arg7[%c32, %c128_10] : memref<192x256xf32, #tpu.memory_space<vmem>>, vector<16x128xf32>
    %10 = arith.addf %8, %9 : vector<16x128xf32>
    %11 = arith.maximumf %7, %10 : vector<16x128xf32>
    %c32_11 = arith.constant 32 : index
    %c0_12 = arith.constant 0 : index
    %12 = vector.load %arg7[%c32_11, %c0_12] : memref<192x256xf32, #tpu.memory_space<vmem>>, vector<16x128xf32>
    %c48 = arith.constant 48 : index
    %c128_13 = arith.constant 128 : index
    %13 = vector.load %arg7[%c48, %c128_13] : memref<192x256xf32, #tpu.memory_space<vmem>>, vector<16x128xf32>
    %14 = arith.addf %12, %13 : vector<16x128xf32>
    %15 = arith.maximumf %11, %14 : vector<16x128xf32>
    %c48_14 = arith.constant 48 : index
    %c0_15 = arith.constant 0 : index
    %16 = vector.load %arg7[%c48_14, %c0_15] : memref<192x256xf32, #tpu.memory_space<vmem>>, vector<16x128xf32>
    %c64 = arith.constant 64 : index
    %c128_16 = arith.constant 128 : index
    %17 = vector.load %arg7[%c64, %c128_16] : memref<192x256xf32, #tpu.memory_space<vmem>>, vector<16x128xf32>
    %18 = arith.addf %16, %17 : vector<16x128xf32>
    %19 = arith.maximumf %15, %18 : vector<16x128xf32>
    %c64_17 = arith.constant 64 : index
    %c0_18 = arith.constant 0 : index
    %20 = vector.load %arg7[%c64_17, %c0_18] : memref<192x256xf32, #tpu.memory_space<vmem>>, vector<16x128xf32>
    %c80 = arith.constant 80 : index
    %c128_19 = arith.constant 128 : index
    %21 = vector.load %arg7[%c80, %c128_19] : memref<192x256xf32, #tpu.memory_space<vmem>>, vector<16x128xf32>
    %22 = arith.addf %20, %21 : vector<16x128xf32>
    %23 = arith.maximumf %19, %22 : vector<16x128xf32>
    %c80_20 = arith.constant 80 : index
    %c0_21 = arith.constant 0 : index
    %24 = vector.load %arg7[%c80_20, %c0_21] : memref<192x256xf32, #tpu.memory_space<vmem>>, vector<16x128xf32>
    %c96 = arith.constant 96 : index
    %c128_22 = arith.constant 128 : index
    %25 = vector.load %arg7[%c96, %c128_22] : memref<192x256xf32, #tpu.memory_space<vmem>>, vector<16x128xf32>
    %26 = arith.addf %24, %25 : vector<16x128xf32>
    %27 = arith.maximumf %23, %26 : vector<16x128xf32>
    %c96_23 = arith.constant 96 : index
    %c0_24 = arith.constant 0 : index
    %28 = vector.load %arg7[%c96_23, %c0_24] : memref<192x256xf32, #tpu.memory_space<vmem>>, vector<16x128xf32>
    %c112 = arith.constant 112 : index
    %c128_25 = arith.constant 128 : index
    %29 = vector.load %arg7[%c112, %c128_25] : memref<192x256xf32, #tpu.memory_space<vmem>>, vector<16x128xf32>
    %30 = arith.addf %28, %29 : vector<16x128xf32>
    %31 = arith.maximumf %27, %30 : vector<16x128xf32>
    %c112_26 = arith.constant 112 : index
    %c0_27 = arith.constant 0 : index
    %32 = vector.load %arg7[%c112_26, %c0_27] : memref<192x256xf32, #tpu.memory_space<vmem>>, vector<16x128xf32>
    %c128_28 = arith.constant 128 : index
    %c128_29 = arith.constant 128 : index
    %33 = vector.load %arg7[%c128_28, %c128_29] : memref<192x256xf32, #tpu.memory_space<vmem>>, vector<16x128xf32>
    %34 = arith.addf %32, %33 : vector<16x128xf32>
    %35 = arith.maximumf %31, %34 : vector<16x128xf32>
    %c128_30 = arith.constant 128 : index
    %c0_31 = arith.constant 0 : index
    %36 = vector.load %arg7[%c128_30, %c0_31] : memref<192x256xf32, #tpu.memory_space<vmem>>, vector<16x128xf32>
    %c144 = arith.constant 144 : index
    %c128_32 = arith.constant 128 : index
    %37 = vector.load %arg7[%c144, %c128_32] : memref<192x256xf32, #tpu.memory_space<vmem>>, vector<16x128xf32>
    %38 = arith.addf %36, %37 : vector<16x128xf32>
    %39 = arith.maximumf %35, %38 : vector<16x128xf32>
    %c144_33 = arith.constant 144 : index
    %c0_34 = arith.constant 0 : index
    %40 = vector.load %arg7[%c144_33, %c0_34] : memref<192x256xf32, #tpu.memory_space<vmem>>, vector<16x128xf32>
    %c160 = arith.constant 160 : index
    %c128_35 = arith.constant 128 : index
    %41 = vector.load %arg7[%c160, %c128_35] : memref<192x256xf32, #tpu.memory_space<vmem>>, vector<16x128xf32>
    %42 = arith.addf %40, %41 : vector<16x128xf32>
    %43 = arith.maximumf %39, %42 : vector<16x128xf32>
    %c160_36 = arith.constant 160 : index
    %c0_37 = arith.constant 0 : index
    %44 = vector.load %arg7[%c160_36, %c0_37] : memref<192x256xf32, #tpu.memory_space<vmem>>, vector<16x128xf32>
    %c176 = arith.constant 176 : index
    %c128_38 = arith.constant 128 : index
    %45 = vector.load %arg7[%c176, %c128_38] : memref<192x256xf32, #tpu.memory_space<vmem>>, vector<16x128xf32>
    %46 = arith.addf %44, %45 : vector<16x128xf32>
    %47 = arith.maximumf %43, %46 : vector<16x128xf32>
    %c0_39 = arith.constant 0 : index
    %c0_40 = arith.constant 0 : index
    %48 = vector.load %arg3[%c0_39, %c0_40] : memref<1x128xf32, #tpu.memory_space<vmem>>, vector<1x128xf32>
    %49 = vector.broadcast %48 : vector<1x128xf32> to vector<16x128xf32>
    %50 = arith.addf %47, %49 : vector<16x128xf32>
    %cst_41 = arith.constant 0.000000e+00 : f32
    %51 = vector.broadcast %cst_41 : f32 to vector<16x128xf32>
    %52 = arith.maximumf %50, %51 : vector<16x128xf32>
    %c0_42 = arith.constant 0 : index
    %c0_43 = arith.constant 0 : index
    %53 = vector.load %arg4[%c0_42, %c0_43] : memref<128x128xf32, #tpu.memory_space<vmem>>, vector<128x128xf32>
    %cst_44 = arith.constant dense<0.000000e+00> : vector<16x128xf32>
    %54 = tpu.matmul %52, %53, %cst_44 {dimension_numbers = #tpu.dot_dimension_numbers<[1], [0], [0], [1], [0, 0, 1, 1], [], []>} : vector<16x128xf32>, vector<128x128xf32>, vector<16x128xf32> -> vector<16x128xf32>
    %c0_45 = arith.constant 0 : index
    %c0_46 = arith.constant 0 : index
    %55 = vector.load %arg5[%c0_45, %c0_46] : memref<1x128xf32, #tpu.memory_space<vmem>>, vector<1x128xf32>
    %56 = vector.broadcast %55 : vector<1x128xf32> to vector<16x128xf32>
    %57 = arith.addf %54, %56 : vector<16x128xf32>
    %cst_47 = arith.constant dense<0xFF800000> : vector<16xf32>
    %58 = vector.multi_reduction <maximumf>, %57, %cst_47 [1] : vector<16x128xf32> to vector<16xf32>
    %59 = vector.shape_cast %58 : vector<16xf32> to vector<16x1xf32>
    %60 = vector.broadcast %59 : vector<16x1xf32> to vector<16x128xf32>
    %61 = arith.subf %57, %60 : vector<16x128xf32>
    %62 = math.exp %61 : vector<16x128xf32>
    %cst_48 = arith.constant dense<0.000000e+00> : vector<16xf32>
    %63 = vector.multi_reduction <add>, %62, %cst_48 [1] : vector<16x128xf32> to vector<16xf32>
    %64 = vector.shape_cast %63 : vector<16xf32> to vector<16x1xf32>
    %65 = vector.broadcast %64 : vector<16x1xf32> to vector<16x128xf32>
    %66 = arith.divf %62, %65 : vector<16x128xf32>
    %c0_49 = arith.constant 0 : index
    %c0_50 = arith.constant 0 : index
    %67 = vector.load %arg6[%c0_49, %c0_50] : memref<16x128xf32, #tpu.memory_space<vmem>>, vector<16x128xf32>
    tpu.vector_store %arg6[%c0_49, %c0_50], %66 {strides = array<i32>} : memref<16x128xf32, #tpu.memory_space<vmem>>, vector<16x128xf32>,
    return
  }
  func.func @transform_0(%arg0: i32) -> (i32, i32, i32) {
    %c0_i32 = arith.constant 0 : i32
    %c0_i32_0 = arith.constant 0 : i32
    %c0_i32_1 = arith.constant 0 : i32
    return %c0_i32, %arg0, %c0_i32_0 : i32, i32, i32
  }
  func.func @transform_1(%arg0: i32) -> (i32, i32) {
    %c0_i32 = arith.constant 0 : i32
    %c0_i32_0 = arith.constant 0 : i32
    %c0_i32_1 = arith.constant 0 : i32
    return %c0_i32, %c0_i32_0 : i32, i32
  }
  func.func @transform_2(%arg0: i32) -> (i32, i32) {
    %c0_i32 = arith.constant 0 : i32
    %c0_i32_0 = arith.constant 0 : i32
    %c0_i32_1 = arith.constant 0 : i32
    return %c0_i32, %c0_i32_0 : i32, i32
  }
  func.func @transform_3(%arg0: i32) -> (i32, i32) {
    %c0_i32 = arith.constant 0 : i32
    %c0_i32_0 = arith.constant 0 : i32
    %c0_i32_1 = arith.constant 0 : i32
    return %c0_i32, %c0_i32_0 : i32, i32
  }
  func.func @transform_4(%arg0: i32) -> (i32, i32) {
    %c0_i32 = arith.constant 0 : i32
    %c0_i32_0 = arith.constant 0 : i32
    %c0_i32_1 = arith.constant 0 : i32
    return %c0_i32, %c0_i32_0 : i32, i32
  }
  func.func @transform_5(%arg0: i32) -> (i32, i32) {
    %c0_i32 = arith.constant 0 : i32
    %c0_i32_0 = arith.constant 0 : i32
    return %arg0, %c0_i32 : i32, i32
  }
}

</mosaic_0001>

<llo_original>
// kernel: tpu_custom_call.1
$region0: #{tpu_custom_call.1}
  #allocation0 [shape = 'u32[]', space=smem, size = 0x4, offset = 0x4, fixed_abs, tag = 'smem constant byte address 0x4 - core index']
  #allocation1 [shape = 'u32[144,128]{1,0:T(1,128)}', space=vmem, size = 0x12000, scoped, tag = 'internal scratch']
  #allocation2 [shape = 'f32[192,256]{1,0:T(8,128)}', space=vmem, size = 0x30000, scoped, tag = 'scratch operand']
  #allocation10 [shape = 's32[]', space=sflag, size = 0x4, offset = 0, fixed_abs, tag = 'sflag constant byte address 0x0 - dummy sync flag']
  %s0 = inlined_call_operand.hbm [shape: bf16[12,32,768], index: 0, kind: input, shape index: {}]
  %s1 = inlined_call_operand.hbm [shape: bf16[768,256], index: 1, kind: input, shape index: {}]
  %s2 = inlined_call_operand.vmem [shape: f32[1,128], index: 2, kind: input, shape index: {}]
  %s3 = inlined_call_operand.hbm [shape: f32[128,128], index: 3, kind: input, shape index: {}]
  %s4 = inlined_call_operand.vmem [shape: f32[1,128], index: 4, kind: input, shape index: {}]
  %s5 = inlined_call_operand.hbm [shape: f32[32,128], index: 5, kind: output, shape index: {}]
  %s6 = sld [smem:[#allocation0]]
  $region65: #{tpu_custom_call.1} parent=0
    _
  %s8 = ssub.s32 1, %s6
  %s9 = scalar_select 0, %s8, %s6
  $region1: #{tpu_custom_call.1} parent=0
    #allocation3 [shape = 'u8[589824]{0}', space=vmem, size = 0x90000, scoped, tag = 'input window, operand 0']
    #allocation4 [shape = 's32[2]{0}', space=sflag, size = 0x8, scoped, tag = 'scoped memory for tpu_custom_call.1']
    #allocation5 [shape = 's32[2]{0}', space=sflag, size = 0x8, scoped, tag = 'scoped memory for tpu_custom_call.1']
    #allocation6 [shape = 'u8[393216]{0}', space=vmem, size = 0x60000, scoped, tag = 'input window, operand 1, single buffered']
    #allocation7 [shape = 's32[1]{0}', space=sflag, size = 0x4, scoped, tag = 'scoped memory for tpu_custom_call.1']
    #allocation8 [shape = 'u8[65536]{0}', space=vmem, size = 0x10000, scoped, tag = 'input window, operand 3, single buffered']
    #allocation9 [shape = 'u8[16384]{0}', space=vmem, size = 0x4000, scoped, tag = 'output window, operand 0']
    %10 = vsyncpa [#allocation4], 0
    %s11 = scalar_lea.sflag [#allocation4], 1
    %12 = vsyncpa %s11, 0
    %13 = vsyncpa [#allocation7], 0
    %14 = vsyncpa [#allocation5], 0
    %s15 = scalar_lea.sflag [#allocation5], 1
    %16 = vsyncpa %s15, 0
    loop: start=0, step=1, limit=4
    $region2: #{tpu_custom_call.1} parent=1 // loop_pre_header
      _
    $region3: #{tpu_custom_call.1} parent=1 // loop_header
      %s18 = sphi 0, %s22
      %p19 = scmp.ge.s32.totalorder %s18, 4
      %s28 = sphi 0, %s30
      %s31 = sphi 0, %s28
      %s32 = sphi 0, %s31
      %s48 = sphi 0, %s32
      %s52 = sphi 0, %s52
      %s54 = sphi 0, %s52
      %s55 = sphi 0, %s54
      %s69 = sphi 0, %s55
      %s73 = sphi 0, %s73
      %s75 = sphi 0, %s73
      %s76 = sphi 0, %s75
      %s90 = sphi 0, %s76
      %s94 = sphi 0, %s94
      %s96 = sphi 0, %s94
      %s97 = sphi 0, %s96
      %s111 = sphi 0, %s97
      %s115 = sphi 0, %s115
      %s117 = sphi 0, %s115
      %s118 = sphi 0, %s117
      %s132 = sphi 0, %s118
      %s138 = sphi 0, %s140
      %s141 = sphi 0, %s138
      %s142 = sphi 0, %s141
      %s158 = sphi 0, %s142
    $region4: #{tpu_custom_call.1} parent=1 // loop_header_branch
      %21 = sbr.rel (%p19) target = $region8
    $region5: #{tpu_custom_call.1} parent=1 // loop_body
      %s23 = ssub.s32 %s18, 1
      %s24 = ssub.s32 %s18, 2
      %s25 = sadd.s32 %s18, 1
      %s26 = ssub.s32 %s18, %s25
      %p27 = scmp.eq.s32.totalorder %s26, 0
      %s29 = sadd.s32 %s28, 1
      %s30 = scalar_select %p27, %s28, %s29
      %p33 = pneg %p27
      %p34 = scmp.eq.s32.totalorder %s18, 1
      %p35 = por %p33, %p34
      %p36 = scmp.ne.s32.totalorder %s28, %s31
      %p37 = scmp.eq.s32.totalorder %s18, 0
      %p38 = por %p36, %p37
      %p39 = scmp.ne.s32.totalorder %s28, %s31
      %p40 = scmp.eq.s32.totalorder %s23, 1
      %p41 = por %p39, %p40
      %p42 = scmp.ne.s32.totalorder %s31, %s32
      %p43 = scmp.eq.s32.totalorder %s23, 0
      %p44 = por %p42, %p43
      %p45 = scmp.ne.s32.totalorder %s31, %s32
      %p46 = scmp.eq.s32.totalorder %s24, 1
      %p47 = por %p45, %p46
      %p49 = scmp.ne.s32.totalorder %s32, %s48
      %p50 = scmp.eq.s32.totalorder %s24, 0
      %p51 = por %p49, %p50
      %s53 = sadd.s32 %s52, 1
      %p56 = scmp.eq.s32.totalorder %s18, 1
      %p57 = scmp.ne.s32.totalorder %s52, %s54
      %p58 = scmp.eq.s32.totalorder %s18, 0
      %p59 = por %p57, %p58
      %p60 = scmp.ne.s32.totalorder %s52, %s54
      %p61 = scmp.eq.s32.totalorder %s23, 1
      %p62 = por %p60, %p61
      %p63 = scmp.ne.s32.totalorder %s54, %s55
      %p64 = scmp.eq.s32.totalorder %s23, 0
      %p65 = por %p63, %p64
      %p66 = scmp.ne.s32.totalorder %s54, %s55
      %p67 = scmp.eq.s32.totalorder %s24, 1
      %p68 = por %p66, %p67
      %p70 = scmp.ne.s32.totalorder %s55, %s69
      %p71 = scmp.eq.s32.totalorder %s24, 0
      %p72 = por %p70, %p71
      %s74 = sadd.s32 %s73, 1
      %p77 = scmp.eq.s32.totalorder %s18, 1
      %p78 = scmp.ne.s32.totalorder %s73, %s75
      %p79 = scmp.eq.s32.totalorder %s18, 0
      %p80 = por %p78, %p79
      %p81 = scmp.ne.s32.totalorder %s73, %s75
      %p82 = scmp.eq.s32.totalorder %s23, 1
      %p83 = por %p81, %p82
      %p84 = scmp.ne.s32.totalorder %s75, %s76
      %p85 = scmp.eq.s32.totalorder %s23, 0
      %p86 = por %p84, %p85
      %p87 = scmp.ne.s32.totalorder %s75, %s76
      %p88 = scmp.eq.s32.totalorder %s24, 1
      %p89 = por %p87, %p88
      %p91 = scmp.ne.s32.totalorder %s76, %s90
      %p92 = scmp.eq.s32.totalorder %s24, 0
      %p93 = por %p91, %p92
      %s95 = sadd.s32 %s94, 1
      %p98 = scmp.eq.s32.totalorder %s18, 1
      %p99 = scmp.ne.s32.totalorder %s94, %s96
      %p100 = scmp.eq.s32.totalorder %s18, 0
      %p101 = por %p99, %p100
      %p102 = scmp.ne.s32.totalorder %s94, %s96
      %p103 = scmp.eq.s32.totalorder %s23, 1
      %p104 = por %p102, %p103
      %p105 = scmp.ne.s32.totalorder %s96, %s97
      %p106 = scmp.eq.s32.totalorder %s23, 0
      %p107 = por %p105, %p106
      %p108 = scmp.ne.s32.totalorder %s96, %s97
      %p109 = scmp.eq.s32.totalorder %s24, 1
      %p110 = por %p108, %p109
      %p112 = scmp.ne.s32.totalorder %s97, %s111
      %p113 = scmp.eq.s32.totalorder %s24, 0
      %p114 = por %p112, %p113
      %s116 = sadd.s32 %s115, 1
      %p119 = scmp.eq.s32.totalorder %s18, 1
      %p120 = scmp.ne.s32.totalorder %s115, %s117
      %p121 = scmp.eq.s32.totalorder %s18, 0
      %p122 = por %p120, %p121
      %p123 = scmp.ne.s32.totalorder %s115, %s117
      %p124 = scmp.eq.s32.totalorder %s23, 1
      %p125 = por %p123, %p124
      %p126 = scmp.ne.s32.totalorder %s117, %s118
      %p127 = scmp.eq.s32.totalorder %s23, 0
      %p128 = por %p126, %p127
      %p129 = scmp.ne.s32.totalorder %s117, %s118
      %p130 = scmp.eq.s32.totalorder %s24, 1
      %p131 = por %p129, %p130
      %p133 = scmp.ne.s32.totalorder %s118, %s132
      %p134 = scmp.eq.s32.totalorder %s24, 0
      %p135 = por %p133, %p134
      %s136 = ssub.s32 %s18, %s25
      %p137 = scmp.eq.s32.totalorder %s136, 0
      %s139 = sadd.s32 %s138, 1
      %s140 = scalar_select %p137, %s138, %s139
      %p143 = pneg %p137
      %p144 = scmp.eq.s32.totalorder %s18, 1
      %p145 = por %p143, %p144
      %p146 = scmp.ne.s32.totalorder %s138, %s141
      %p147 = scmp.eq.s32.totalorder %s18, 0
      %p148 = por %p146, %p147
      %p149 = scmp.ne.s32.totalorder %s138, %s141
      %p150 = scmp.eq.s32.totalorder %s23, 1
      %p151 = por %p149, %p150
      %p152 = scmp.ne.s32.totalorder %s141, %s142
      %p153 = scmp.eq.s32.totalorder %s23, 0
      %p154 = por %p152, %p153
      %p155 = scmp.ne.s32.totalorder %s141, %s142
      %p156 = scmp.eq.s32.totalorder %s24, 1
      %p157 = por %p155, %p156
      %p159 = scmp.ne.s32.totalorder %s142, %s158
      %p160 = scmp.eq.s32.totalorder %s24, 0
      %p161 = por %p159, %p160
      %p162 = scmp.le.s32.totalorder 1, %s18
      %p163 = scmp.lt.s32.totalorder %s18, 3
      %p164 = pnand %p162, %p163
      %p165 = pneg %p164
      // Predicated region
      $region9: #{tpu_custom_call.1} parent=5 // pred_check
        _
      $region10: #{tpu_custom_call.1} parent=5 // pred_check_branch
        %167 = sbr.rel (%p164) target = $region12
      $region11: #{tpu_custom_call.1} parent=5 // pred_region
        %s168 = ssub.s32 %s18, 1
        // Predicated region
        $region13: #{tpu_custom_call.1} parent=11 // pred_check
          %p169 = pneg %p65
        $region14: #{tpu_custom_call.1} parent=11 // pred_check_branch
          %171 = sbr.rel (%p169) target = $region16
        $region15: #{tpu_custom_call.1} parent=11 // pred_region
          %s173 = ssub.s32 12288, 12288
          %174 = vsyncadd [#allocation7], %s173
          %s175 = sshll.u32 [#allocation6], 4
          %s176 = int_to_ptr.vmem [resolvable:$true] %s175
          %181 = dma.hbm_to_vmem [thread:$0]  %s1, 12288, %s176, [#allocation7], 128, 128, 8
        $region16: #{tpu_custom_call.1} parent=11 // pred_fallthru
          _
        // Predicated region
        $region17: #{tpu_custom_call.1} parent=11 // pred_check
          %p182 = pneg %p86
        $region18: #{tpu_custom_call.1} parent=11 // pred_check_branch
          %184 = sbr.rel (%p182) target = $region20
        $region19: #{tpu_custom_call.1} parent=11 // pred_region
          _
        $region20: #{tpu_custom_call.1} parent=11 // pred_fallthru
          _
        // Predicated region
        $region21: #{tpu_custom_call.1} parent=11 // pred_check
          %p185 = pneg %p107
        $region22: #{tpu_custom_call.1} parent=11 // pred_check_branch
          %187 = sbr.rel (%p185) target = $region24
        $region23: #{tpu_custom_call.1} parent=11 // pred_region
          %s189 = ssub.s32 2048, 2048
          %190 = vsyncadd [#allocation7], %s189
          %s191 = sshll.u32 [#allocation8], 4
          %s192 = int_to_ptr.vmem [resolvable:$true] %s191
          %197 = dma.hbm_to_vmem [thread:$0]  %s3, 2048, %s192, [#allocation7], 128, 128, 8
        $region24: #{tpu_custom_call.1} parent=11 // pred_fallthru
          _
        // Predicated region
        $region25: #{tpu_custom_call.1} parent=11 // pred_check
          %p198 = pneg %p128
        $region26: #{tpu_custom_call.1} parent=11 // pred_check_branch
          %200 = sbr.rel (%p198) target = $region28
        $region27: #{tpu_custom_call.1} parent=11 // pred_region
          _
        $region28: #{tpu_custom_call.1} parent=11 // pred_fallthru
          _
      $region12: #{tpu_custom_call.1} parent=5 // pred_fallthru
        _
      %p201 = scmp.lt.s32.totalorder %s18, 2
      // Predicated region
      $region29: #{tpu_custom_call.1} parent=5 // pred_check
        %p202 = pneg %p201
      $region30: #{tpu_custom_call.1} parent=5 // pred_check_branch
        %204 = sbr.rel (%p202) target = $region32
      $region31: #{tpu_custom_call.1} parent=5 // pred_region
        // Predicated region
        $region33: #{tpu_custom_call.1} parent=31 // pred_check
          %p205 = pneg %p38
        $region34: #{tpu_custom_call.1} parent=31 // pred_check_branch
          %207 = sbr.rel (%p205) target = $region36
        $region35: #{tpu_custom_call.1} parent=31 // pred_region
          #allocation11 [shape = 'u32[6]{0}', space=smem, size = 0x18, scoped, tag = 'DMA stride descriptor']
          %s208 = sand.u32 %s28, 1
          %s209 = scalar_lea.sflag [#allocation4], %s208
          %s210 = sand.u32 %s28, 1
          %s211 = smul.addr %s210, 576
          %s212 = scalar_lea.vmem [#allocation3], %s211
          %s213 = smul.u32 2, %s18
          %s215 = ssub.s32 9216, 9216
          %216 = vsyncadd %s209, %s215
          %s217 = smul.addr %s213, 6
          %s218 = smul.addr %s217, 64
          %s219 = scalar_lea.hbm %s0, %s218
          %s221 = sshll.u32 1, 14
          %s222 = sxor.u32 4294967295, %s221
          %s224 = sld [smem:[#allocation0]]
          %s225 = sadd.s32 2, %s224
          %s227 = sshll.u32 7, 26
          %s228 = sxor.u32 4294967295, %s227
          %s229 = sand.u32 0, %s228
          %s230 = sshll.u32 %s225, 26
          %s231 = sor.u32 %s229, %s230
          %s232 = sshll.u32 %s212, 4
          %s233 = int_to_ptr.vmem [resolvable:$true] %s232
          %239 = sst [smem:[#allocation11]] 1536
          %s240 = scalar_lea.smem [#allocation11], 1
          %241 = sst [smem:[%s240]] 768
          %s242 = scalar_lea.smem [#allocation11], 2
          %243 = sst [smem:[%s242]] 2
          %s244 = scalar_lea.smem [#allocation11], 3
          %245 = sst [smem:[%s244]] 384
          %s246 = scalar_lea.smem [#allocation11], 4
          %247 = sst [smem:[%s246]] 384
          %s248 = scalar_lea.smem [#allocation11], 5
          %249 = sst [smem:[%s248]] 24
          %251 = dma.general %s219, 9216, %s233, %s209, 131072, [#allocation11], %s231, 0
        $region36: #{tpu_custom_call.1} parent=31 // pred_fallthru
          _
      $region32: #{tpu_custom_call.1} parent=5 // pred_fallthru
        _
      %p252 = scmp.le.s32.totalorder 1, %s18
      %p253 = scmp.lt.s32.totalorder %s18, 3
      %p254 = pnand %p252, %p253
      %p255 = pneg %p254
      // Predicated region
      $region37: #{tpu_custom_call.1} parent=5 // pred_check
        _
      $region38: #{tpu_custom_call.1} parent=5 // pred_check_branch
        %257 = sbr.rel (%p254) target = $region40
      $region39: #{tpu_custom_call.1} parent=5 // pred_region
        %s258 = ssub.s32 %s18, 1
        %s259 = sand.u32 %s31, 1
        %s260 = scalar_lea.sflag [#allocation4], %s259
        %s261 = sand.u32 %s31, 1
        %s262 = smul.addr %s261, 576
        %s263 = scalar_lea.vmem [#allocation3], %s262
        // Predicated region
        $region41: #{tpu_custom_call.1} parent=39 // pred_check
          %p264 = pneg %p44
        $region42: #{tpu_custom_call.1} parent=39 // pred_check_branch
          %266 = sbr.rel (%p264) target = $region44
        $region43: #{tpu_custom_call.1} parent=39 // pred_region
          %267 = dma.done %s260, 9216
        $region44: #{tpu_custom_call.1} parent=39 // pred_fallthru
          _
        // Predicated region
        $region45: #{tpu_custom_call.1} parent=39 // pred_check
          %p268 = pneg %p65
        $region46: #{tpu_custom_call.1} parent=39 // pred_check_branch
          %270 = sbr.rel (%p268) target = $region48
        $region47: #{tpu_custom_call.1} parent=39 // pred_region
          %271 = dma.done [#allocation7], 12288
        $region48: #{tpu_custom_call.1} parent=39 // pred_fallthru
          _
        // Predicated region
        $region49: #{tpu_custom_call.1} parent=39 // pred_check
          %p272 = pneg %p107
        $region50: #{tpu_custom_call.1} parent=39 // pred_check_branch
          %274 = sbr.rel (%p272) target = $region52
        $region51: #{tpu_custom_call.1} parent=39 // pred_region
          %275 = dma.done [#allocation7], 2048
        $region52: #{tpu_custom_call.1} parent=39 // pred_fallthru
          _
        %s276 = sand.u32 %s31, 1
        %s277 = scalar_lea.sflag [#allocation4], %s276
        %s278 = sand.u32 %s31, 1
        %s279 = smul.addr %s278, 576
        %s280 = scalar_lea.vmem [#allocation3], %s279
        %p281 = pneg %p44
        %p282 = pneg %p41
        %p283 = pneg %p65
        %p284 = pneg %p62
        %p285 = pneg %p86
        %p286 = pneg %p83
        %p287 = pneg %p107
        %p288 = pneg %p104
        %p289 = pneg %p128
        %p290 = pneg %p125
        %p291 = pneg %p154
        %p292 = pneg %p151
        %s293 = sand.u32 %s141, 1
        %s294 = scalar_lea.sflag [#allocation5], %s293
        %s295 = sand.u32 %s141, 1
        %s296 = smul.addr %s295, 16
        %s297 = scalar_lea.vmem [#allocation9], %s296
        %s298 = smul.u32 2, %s23
        %s299 = smul.u32 2, %s23
        %v300 = vld [vmem:[%s263] sm:$0xff]
        %v301 = vld [vmem:[%s263 + $0x8] sm:$0xff]
        %v302 = vld [vmem:[%s263 + $0x10] sm:$0xff]
        %v303 = vld [vmem:[%s263 + $0x18] sm:$0xff]
        %v304 = vld [vmem:[%s263 + $0x20] sm:$0xff]
        %v305 = vld [vmem:[%s263 + $0x28] sm:$0xff]
        %v306 = vld [vmem:[%s263 + $0x30] sm:$0xff]
        %v307 = vld [vmem:[%s263 + $0x38] sm:$0xff]
        %v308 = vld [vmem:[%s263 + $0x40] sm:$0xff]
        %v309 = vld [vmem:[%s263 + $0x48] sm:$0xff]
        %v310 = vld [vmem:[%s263 + $0x50] sm:$0xff]
        %v311 = vld [vmem:[%s263 + $0x58] sm:$0xff]
        %v312 = vld [vmem:[%s263 + $0x60] sm:$0xff]
        %v313 = vld [vmem:[%s263 + $0x68] sm:$0xff]
        %v314 = vld [vmem:[%s263 + $0x70] sm:$0xff]
        %v315 = vld [vmem:[%s263 + $0x78] sm:$0xff]
        %v316 = vld [vmem:[%s263 + $0x80] sm:$0xff]
        %v317 = vld [vmem:[%s263 + $0x88] sm:$0xff]
        %v318 = vld [vmem:[%s263 + $0x90] sm:$0xff]
        %v319 = vld [vmem:[%s263 + $0x98] sm:$0xff]
        %v320 = vld [vmem:[%s263 + $0xa0] sm:$0xff]
        %v321 = vld [vmem:[%s263 + $0xa8] sm:$0xff]
        %v322 = vld [vmem:[%s263 + $0xb0] sm:$0xff]
        %v323 = vld [vmem:[%s263 + $0xb8] sm:$0xff]
        %v324 = vld [vmem:[%s263 + $0xc0] sm:$0xff]
        %v325 = vld [vmem:[%s263 + $0xc8] sm:$0xff]
        %v326 = vld [vmem:[%s263 + $0xd0] sm:$0xff]
        %v327 = vld [vmem:[%s263 + $0xd8] sm:$0xff]
        %v328 = vld [vmem:[%s263 + $0xe0] sm:$0xff]
        %v329 = vld [vmem:[%s263 + $0xe8] sm:$0xff]
        %v330 = vld [vmem:[%s263 + $0xf0] sm:$0xff]
        %v331 = vld [vmem:[%s263 + $0xf8] sm:$0xff]
        %v332 = vld [vmem:[%s263 + $0x100] sm:$0xff]
        %v333 = vld [vmem:[%s263 + $0x108] sm:$0xff]
        %v334 = vld [vmem:[%s263 + $0x110] sm:$0xff]
        %v335 = vld [vmem:[%s263 + $0x118] sm:$0xff]
        %v336 = vld [vmem:[%s263 + $0x120] sm:$0xff]
        %v337 = vld [vmem:[%s263 + $0x128] sm:$0xff]
        %v338 = vld [vmem:[%s263 + $0x130] sm:$0xff]
        %v339 = vld [vmem:[%s263 + $0x138] sm:$0xff]
        %v340 = vld [vmem:[%s263 + $0x140] sm:$0xff]
        %v341 = vld [vmem:[%s263 + $0x148] sm:$0xff]
        %v342 = vld [vmem:[%s263 + $0x150] sm:$0xff]
        %v343 = vld [vmem:[%s263 + $0x158] sm:$0xff]
        %v344 = vld [vmem:[%s263 + $0x160] sm:$0xff]
        %v345 = vld [vmem:[%s263 + $0x168] sm:$0xff]
        %v346 = vld [vmem:[%s263 + $0x170] sm:$0xff]
        %v347 = vld [vmem:[%s263 + $0x178] sm:$0xff]
        %v348 = vld [vmem:[%s263 + $0x180] sm:$0xff]
        %v349 = vld [vmem:[%s263 + $0x188] sm:$0xff]
        %v350 = vld [vmem:[%s263 + $0x190] sm:$0xff]
        %v351 = vld [vmem:[%s263 + $0x198] sm:$0xff]
        %v352 = vld [vmem:[%s263 + $0x1a0] sm:$0xff]
        %v353 = vld [vmem:[%s263 + $0x1a8] sm:$0xff]
        %v354 = vld [vmem:[%s263 + $0x1b0] sm:$0xff]
        %v355 = vld [vmem:[%s263 + $0x1b8] sm:$0xff]
        %v356 = vld [vmem:[%s263 + $0x1c0] sm:$0xff]
        %v357 = vld [vmem:[%s263 + $0x1c8] sm:$0xff]
        %v358 = vld [vmem:[%s263 + $0x1d0] sm:$0xff]
        %v359 = vld [vmem:[%s263 + $0x1d8] sm:$0xff]
        %v360 = vld [vmem:[%s263 + $0x1e0] sm:$0xff]
        %v361 = vld [vmem:[%s263 + $0x1e8] sm:$0xff]
        %v362 = vld [vmem:[%s263 + $0x1f0] sm:$0xff]
        %v363 = vld [vmem:[%s263 + $0x1f8] sm:$0xff]
        %v364 = vld [vmem:[%s263 + $0x200] sm:$0xff]
        %v365 = vld [vmem:[%s263 + $0x208] sm:$0xff]
        %v366 = vld [vmem:[%s263 + $0x210] sm:$0xff]
        %v367 = vld [vmem:[%s263 + $0x218] sm:$0xff]
        %v368 = vld [vmem:[%s263 + $0x220] sm:$0xff]
        %v369 = vld [vmem:[%s263 + $0x228] sm:$0xff]
        %v370 = vld [vmem:[%s263 + $0x230] sm:$0xff]
        %v371 = vld [vmem:[%s263 + $0x238] sm:$0xff]
        %v372 = vld [vmem:[#allocation6] sm:$0xff]
        %v373 = vld [vmem:[#allocation6 + $0x8] sm:$0xff]
        %v374 = vld [vmem:[#allocation6 + $0x10] sm:$0xff]
        %v375 = vld [vmem:[#allocation6 + $0x18] sm:$0xff]
        %v376 = vld [vmem:[#allocation6 + $0x20] sm:$0xff]
        %v377 = vld [vmem:[#allocation6 + $0x28] sm:$0xff]
        %v378 = vld [vmem:[#allocation6 + $0x30] sm:$0xff]
        %v379 = vld [vmem:[#allocation6 + $0x38] sm:$0xff]
        %v380 = vld [vmem:[#allocation6 + $0x40] sm:$0xff]
        %v381 = vld [vmem:[#allocation6 + $0x48] sm:$0xff]
        %v382 = vld [vmem:[#allocation6 + $0x50] sm:$0xff]
        %v383 = vld [vmem:[#allocation6 + $0x58] sm:$0xff]
        %v384 = vld [vmem:[#allocation6 + $0x60] sm:$0xff]
        %v385 = vld [vmem:[#allocation6 + $0x68] sm:$0xff]
        %v386 = vld [vmem:[#allocation6 + $0x70] sm:$0xff]
        %v387 = vld [vmem:[#allocation6 + $0x78] sm:$0xff]
        %v388 = vld [vmem:[#allocation6 + $0x80] sm:$0xff]
        %v389 = vld [vmem:[#allocation6 + $0x88] sm:$0xff]
        %v390 = vld [vmem:[#allocation6 + $0x90] sm:$0xff]
        %v391 = vld [vmem:[#allocation6 + $0x98] sm:$0xff]
        %v392 = vld [vmem:[#allocation6 + $0xa0] sm:$0xff]
        %v393 = vld [vmem:[#allocation6 + $0xa8] sm:$0xff]
        %v394 = vld [vmem:[#allocation6 + $0xb0] sm:$0xff]
        %v395 = vld [vmem:[#allocation6 + $0xb8] sm:$0xff]
        %v396 = vld [vmem:[#allocation6 + $0xc0] sm:$0xff]
        %v397 = vld [vmem:[#allocation6 + $0xc8] sm:$0xff]
        %v398 = vld [vmem:[#allocation6 + $0xd0] sm:$0xff]
        %v399 = vld [vmem:[#allocation6 + $0xd8] sm:$0xff]
        %v400 = vld [vmem:[#allocation6 + $0xe0] sm:$0xff]
        %v401 = vld [vmem:[#allocation6 + $0xe8] sm:$0xff]
        %v402 = vld [vmem:[#allocation6 + $0xf0] sm:$0xff]
        %v403 = vld [vmem:[#allocation6 + $0xf8] sm:$0xff]
        %v404 = vld [vmem:[#allocation6 + $0x100] sm:$0xff]
        %v405 = vld [vmem:[#allocation6 + $0x108] sm:$0xff]
        %v406 = vld [vmem:[#allocation6 + $0x110] sm:$0xff]
        %v407 = vld [vmem:[#allocation6 + $0x118] sm:$0xff]
        %v408 = vld [vmem:[#allocation6 + $0x120] sm:$0xff]
        %v409 = vld [vmem:[#allocation6 + $0x128] sm:$0xff]
        %v410 = vld [vmem:[#allocation6 + $0x130] sm:$0xff]
        %v411 = vld [vmem:[#allocation6 + $0x138] sm:$0xff]
        %v412 = vld [vmem:[#allocation6 + $0x140] sm:$0xff]
        %v413 = vld [vmem:[#allocation6 + $0x148] sm:$0xff]
        %v414 = vld [vmem:[#allocation6 + $0x150] sm:$0xff]
        %v415 = vld [vmem:[#allocation6 + $0x158] sm:$0xff]
        %v416 = vld [vmem:[#allocation6 + $0x160] sm:$0xff]
        %v417 = vld [vmem:[#allocation6 + $0x168] sm:$0xff]
        %v418 = vld [vmem:[#allocation6 + $0x170] sm:$0xff]
        %v419 = vld [vmem:[#allocation6 + $0x178] sm:$0xff]
        %v420 = vld [vmem:[#allocation6 + $0x180] sm:$0xff]
        %v421 = vld [vmem:[#allocation6 + $0x188] sm:$0xff]
        %v422 = vld [vmem:[#allocation6 + $0x190] sm:$0xff]
        %v423 = vld [vmem:[#allocation6 + $0x198] sm:$0xff]
        %v424 = vld [vmem:[#allocation6 + $0x1a0] sm:$0xff]
        %v425 = vld [vmem:[#allocation6 + $0x1a8] sm:$0xff]
        %v426 = vld [vmem:[#allocation6 + $0x1b0] sm:$0xff]
        %v427 = vld [vmem:[#allocation6 + $0x1b8] sm:$0xff]
        %v428 = vld [vmem:[#allocation6 + $0x1c0] sm:$0xff]
        %v429 = vld [vmem:[#allocation6 + $0x1c8] sm:$0xff]
        %v430 = vld [vmem:[#allocation6 + $0x1d0] sm:$0xff]
        %v431 = vld [vmem:[#allocation6 + $0x1d8] sm:$0xff]
        %v432 = vld [vmem:[#allocation6 + $0x1e0] sm:$0xff]
        %v433 = vld [vmem:[#allocation6 + $0x1e8] sm:$0xff]
        %v434 = vld [vmem:[#allocation6 + $0x1f0] sm:$0xff]
        %v435 = vld [vmem:[#allocation6 + $0x1f8] sm:$0xff]
        %v436 = vld [vmem:[#allocation6 + $0x200] sm:$0xff]
        %v437 = vld [vmem:[#allocation6 + $0x208] sm:$0xff]
        %v438 = vld [vmem:[#allocation6 + $0x210] sm:$0xff]
        %v439 = vld [vmem:[#allocation6 + $0x218] sm:$0xff]
        %v440 = vld [vmem:[#allocation6 + $0x220] sm:$0xff]
        %v441 = vld [vmem:[#allocation6 + $0x228] sm:$0xff]
        %v442 = vld [vmem:[#allocation6 + $0x230] sm:$0xff]
        %v443 = vld [vmem:[#allocation6 + $0x238] sm:$0xff]
        %v444 = vld [vmem:[#allocation6 + $0x240] sm:$0xff]
        %v445 = vld [vmem:[#allocation6 + $0x248] sm:$0xff]
        %v446 = vld [vmem:[#allocation6 + $0x250] sm:$0xff]
        %v447 = vld [vmem:[#allocation6 + $0x258] sm:$0xff]
        %v448 = vld [vmem:[#allocation6 + $0x260] sm:$0xff]
        %v449 = vld [vmem:[#allocation6 + $0x268] sm:$0xff]
        %v450 = vld [vmem:[#allocation6 + $0x270] sm:$0xff]
        %v451 = vld [vmem:[#allocation6 + $0x278] sm:$0xff]
        %v452 = vld [vmem:[#allocation6 + $0x280] sm:$0xff]
        %v453 = vld [vmem:[#allocation6 + $0x288] sm:$0xff]
        %v454 = vld [vmem:[#allocation6 + $0x290] sm:$0xff]
        %v455 = vld [vmem:[#allocation6 + $0x298] sm:$0xff]
        %v456 = vld [vmem:[#allocation6 + $0x2a0] sm:$0xff]
        %v457 = vld [vmem:[#allocation6 + $0x2a8] sm:$0xff]
        %v458 = vld [vmem:[#allocation6 + $0x2b0] sm:$0xff]
        %v459 = vld [vmem:[#allocation6 + $0x2b8] sm:$0xff]
        %v460 = vld [vmem:[#allocation6 + $0x2c0] sm:$0xff]
        %v461 = vld [vmem:[#allocation6 + $0x2c8] sm:$0xff]
        %v462 = vld [vmem:[#allocation6 + $0x2d0] sm:$0xff]
        %v463 = vld [vmem:[#allocation6 + $0x2d8] sm:$0xff]
        %v464 = vld [vmem:[#allocation6 + $0x2e0] sm:$0xff]
        %v465 = vld [vmem:[#allocation6 + $0x2e8] sm:$0xff]
        %v466 = vld [vmem:[#allocation6 + $0x2f0] sm:$0xff]
        %v467 = vld [vmem:[#allocation6 + $0x2f8] sm:$0xff]
        %v540 = vunpack.c.l.b16 %v300
        %v541 = vunpack.c.h.b16 %v300
        %v542 = vunpack.c.l.b16 %v301
        %v543 = vunpack.c.h.b16 %v301
        %v544 = vunpack.c.l.b16 %v302
        %v545 = vunpack.c.h.b16 %v302
        %v546 = vunpack.c.l.b16 %v303
        %v547 = vunpack.c.h.b16 %v303
        %v548 = vunpack.c.l.b16 %v304
        %v549 = vunpack.c.h.b16 %v304
        %v550 = vunpack.c.l.b16 %v305
        %v551 = vunpack.c.h.b16 %v305
        %v552 = vunpack.c.l.b16 %v306
        %v553 = vunpack.c.h.b16 %v306
        %v554 = vunpack.c.l.b16 %v307
        %v555 = vunpack.c.h.b16 %v307
        %v556 = vunpack.c.l.b16 %v308
        %v557 = vunpack.c.h.b16 %v308
        %v558 = vunpack.c.l.b16 %v309
        %v559 = vunpack.c.h.b16 %v309
        %v560 = vunpack.c.l.b16 %v310
        %v561 = vunpack.c.h.b16 %v310
        %v562 = vunpack.c.l.b16 %v311
        %v563 = vunpack.c.h.b16 %v311
        %v564 = vunpack.c.l.b16 %v312
        %v565 = vunpack.c.h.b16 %v312
        %v566 = vunpack.c.l.b16 %v313
        %v567 = vunpack.c.h.b16 %v313
        %v568 = vunpack.c.l.b16 %v314
        %v569 = vunpack.c.h.b16 %v314
        %v570 = vunpack.c.l.b16 %v315
        %v571 = vunpack.c.h.b16 %v315
        %v572 = vunpack.c.l.b16 %v316
        %v573 = vunpack.c.h.b16 %v316
        %v574 = vunpack.c.l.b16 %v317
        %v575 = vunpack.c.h.b16 %v317
        %v576 = vunpack.c.l.b16 %v318
        %v577 = vunpack.c.h.b16 %v318
        %v578 = vunpack.c.l.b16 %v319
        %v579 = vunpack.c.h.b16 %v319
        %v580 = vunpack.c.l.b16 %v320
        %v581 = vunpack.c.h.b16 %v320
        %v582 = vunpack.c.l.b16 %v321
        %v583 = vunpack.c.h.b16 %v321
        %v584 = vunpack.c.l.b16 %v322
        %v585 = vunpack.c.h.b16 %v322
        %v586 = vunpack.c.l.b16 %v323
        %v587 = vunpack.c.h.b16 %v323
        %v588 = vunpack.c.l.b16 %v324
        %v589 = vunpack.c.h.b16 %v324
        %v590 = vunpack.c.l.b16 %v325
        %v591 = vunpack.c.h.b16 %v325
        %v592 = vunpack.c.l.b16 %v326
        %v593 = vunpack.c.h.b16 %v326
        %v594 = vunpack.c.l.b16 %v327
        %v595 = vunpack.c.h.b16 %v327
        %v596 = vunpack.c.l.b16 %v328
        %v597 = vunpack.c.h.b16 %v328
        %v598 = vunpack.c.l.b16 %v329
        %v599 = vunpack.c.h.b16 %v329
        %v600 = vunpack.c.l.b16 %v330
        %v601 = vunpack.c.h.b16 %v330
        %v602 = vunpack.c.l.b16 %v331
        %v603 = vunpack.c.h.b16 %v331
        %v604 = vunpack.c.l.b16 %v332
        %v605 = vunpack.c.h.b16 %v332
        %v606 = vunpack.c.l.b16 %v333
        %v607 = vunpack.c.h.b16 %v333
        %v608 = vunpack.c.l.b16 %v334
        %v609 = vunpack.c.h.b16 %v334
        %v610 = vunpack.c.l.b16 %v335
        %v611 = vunpack.c.h.b16 %v335
        %v612 = vunpack.c.l.b16 %v336
        %v613 = vunpack.c.h.b16 %v336
        %v614 = vunpack.c.l.b16 %v337
        %v615 = vunpack.c.h.b16 %v337
        %v616 = vunpack.c.l.b16 %v338
        %v617 = vunpack.c.h.b16 %v338
        %v618 = vunpack.c.l.b16 %v339
        %v619 = vunpack.c.h.b16 %v339
        %v620 = vunpack.c.l.b16 %v340
        %v621 = vunpack.c.h.b16 %v340
        %v622 = vunpack.c.l.b16 %v341
        %v623 = vunpack.c.h.b16 %v341
        %v624 = vunpack.c.l.b16 %v342
        %v625 = vunpack.c.h.b16 %v342
        %v626 = vunpack.c.l.b16 %v343
        %v627 = vunpack.c.h.b16 %v343
        %v628 = vunpack.c.l.b16 %v344
        %v629 = vunpack.c.h.b16 %v344
        %v630 = vunpack.c.l.b16 %v345
        %v631 = vunpack.c.h.b16 %v345
        %v632 = vunpack.c.l.b16 %v346
        %v633 = vunpack.c.h.b16 %v346
        %v634 = vunpack.c.l.b16 %v347
        %v635 = vunpack.c.h.b16 %v347
        %v636 = vunpack.c.l.b16 %v348
        %v637 = vunpack.c.h.b16 %v348
        %v638 = vunpack.c.l.b16 %v349
        %v639 = vunpack.c.h.b16 %v349
        %v640 = vunpack.c.l.b16 %v350
        %v641 = vunpack.c.h.b16 %v350
        %v642 = vunpack.c.l.b16 %v351
        %v643 = vunpack.c.h.b16 %v351
        %v644 = vunpack.c.l.b16 %v352
        %v645 = vunpack.c.h.b16 %v352
        %v646 = vunpack.c.l.b16 %v353
        %v647 = vunpack.c.h.b16 %v353
        %v648 = vunpack.c.l.b16 %v354
        %v649 = vunpack.c.h.b16 %v354
        %v650 = vunpack.c.l.b16 %v355
        %v651 = vunpack.c.h.b16 %v355
        %v652 = vunpack.c.l.b16 %v356
        %v653 = vunpack.c.h.b16 %v356
        %v654 = vunpack.c.l.b16 %v357
        %v655 = vunpack.c.h.b16 %v357
        %v656 = vunpack.c.l.b16 %v358
        %v657 = vunpack.c.h.b16 %v358
        %v658 = vunpack.c.l.b16 %v359
        %v659 = vunpack.c.h.b16 %v359
        %v660 = vunpack.c.l.b16 %v360
        %v661 = vunpack.c.h.b16 %v360
        %v662 = vunpack.c.l.b16 %v361
        %v663 = vunpack.c.h.b16 %v361
        %v664 = vunpack.c.l.b16 %v362
        %v665 = vunpack.c.h.b16 %v362
        %v666 = vunpack.c.l.b16 %v363
        %v667 = vunpack.c.h.b16 %v363
        %v668 = vunpack.c.l.b16 %v364
        %v669 = vunpack.c.h.b16 %v364
        %v670 = vunpack.c.l.b16 %v365
        %v671 = vunpack.c.h.b16 %v365
        %v672 = vunpack.c.l.b16 %v366
        %v673 = vunpack.c.h.b16 %v366
        %v674 = vunpack.c.l.b16 %v367
        %v675 = vunpack.c.h.b16 %v367
        %v676 = vunpack.c.l.b16 %v368
        %v677 = vunpack.c.h.b16 %v368
        %v678 = vunpack.c.l.b16 %v369
        %v679 = vunpack.c.h.b16 %v369
        %v680 = vunpack.c.l.b16 %v370
        %v681 = vunpack.c.h.b16 %v370
        %v682 = vunpack.c.l.b16 %v371
        %v683 = vunpack.c.h.b16 %v371
        %v684 = vpack.c.b16 %v546, %v540
        %v685 = vpack.c.b16 %v547, %v541
        %v686 = vpack.c.b16 %v548, %v542
        %v687 = vpack.c.b16 %v549, %v543
        %v688 = vpack.c.b16 %v550, %v544
        %v689 = vpack.c.b16 %v551, %v545
        %v690 = vpack.c.b16 %v558, %v552
        %v691 = vpack.c.b16 %v559, %v553
        %v692 = vpack.c.b16 %v560, %v554
        %v693 = vpack.c.b16 %v561, %v555
        %v694 = vpack.c.b16 %v562, %v556
        %v695 = vpack.c.b16 %v563, %v557
        %v696 = vpack.c.b16 %v570, %v564
        %v697 = vpack.c.b16 %v571, %v565
        %v698 = vpack.c.b16 %v572, %v566
        %v699 = vpack.c.b16 %v573, %v567
        %v700 = vpack.c.b16 %v574, %v568
        %v701 = vpack.c.b16 %v575, %v569
        %v702 = vpack.c.b16 %v582, %v576
        %v703 = vpack.c.b16 %v583, %v577
        %v704 = vpack.c.b16 %v584, %v578
        %v705 = vpack.c.b16 %v585, %v579
        %v706 = vpack.c.b16 %v586, %v580
        %v707 = vpack.c.b16 %v587, %v581
        %v708 = vpack.c.b16 %v594, %v588
        %v709 = vpack.c.b16 %v595, %v589
        %v710 = vpack.c.b16 %v596, %v590
        %v711 = vpack.c.b16 %v597, %v591
        %v712 = vpack.c.b16 %v598, %v592
        %v713 = vpack.c.b16 %v599, %v593
        %v714 = vpack.c.b16 %v606, %v600
        %v715 = vpack.c.b16 %v607, %v601
        %v716 = vpack.c.b16 %v608, %v602
        %v717 = vpack.c.b16 %v609, %v603
        %v718 = vpack.c.b16 %v610, %v604
        %v719 = vpack.c.b16 %v611, %v605
        %v720 = vpack.c.b16 %v618, %v612
        %v721 = vpack.c.b16 %v619, %v613
        %v722 = vpack.c.b16 %v620, %v614
        %v723 = vpack.c.b16 %v621, %v615
        %v724 = vpack.c.b16 %v622, %v616
        %v725 = vpack.c.b16 %v623, %v617
        %v726 = vpack.c.b16 %v630, %v624
        %v727 = vpack.c.b16 %v631, %v625
        %v728 = vpack.c.b16 %v632, %v626
        %v729 = vpack.c.b16 %v633, %v627
        %v730 = vpack.c.b16 %v634, %v628
        %v731 = vpack.c.b16 %v635, %v629
        %v732 = vpack.c.b16 %v642, %v636
        %v733 = vpack.c.b16 %v643, %v637
        %v734 = vpack.c.b16 %v644, %v638
        %v735 = vpack.c.b16 %v645, %v639
        %v736 = vpack.c.b16 %v646, %v640
        %v737 = vpack.c.b16 %v647, %v641
        %v738 = vpack.c.b16 %v654, %v648
        %v739 = vpack.c.b16 %v655, %v649
        %v740 = vpack.c.b16 %v656, %v650
        %v741 = vpack.c.b16 %v657, %v651
        %v742 = vpack.c.b16 %v658, %v652
        %v743 = vpack.c.b16 %v659, %v653
        %v744 = vpack.c.b16 %v666, %v660
        %v745 = vpack.c.b16 %v667, %v661
        %v746 = vpack.c.b16 %v668, %v662
        %v747 = vpack.c.b16 %v669, %v663
        %v748 = vpack.c.b16 %v670, %v664
        %v749 = vpack.c.b16 %v671, %v665
        %v750 = vpack.c.b16 %v678, %v672
        %v751 = vpack.c.b16 %v679, %v673
        %v752 = vpack.c.b16 %v680, %v674
        %v753 = vpack.c.b16 %v681, %v675
        %v754 = vpack.c.b16 %v682, %v676
        %v755 = vpack.c.b16 %v683, %v677
        %v924 = vunpack.c.l.b16 %v372
        %v925 = vunpack.c.h.b16 %v372
        %v926 = vunpack.c.l.b16 %v373
        %v927 = vunpack.c.h.b16 %v373
        %v928 = vunpack.c.l.b16 %v374
        %v929 = vunpack.c.h.b16 %v374
        %v930 = vunpack.c.l.b16 %v375
        %v931 = vunpack.c.h.b16 %v375
        %v932 = vunpack.c.l.b16 %v376
        %v933 = vunpack.c.h.b16 %v376
        %v934 = vunpack.c.l.b16 %v377
        %v935 = vunpack.c.h.b16 %v377
        %v936 = vunpack.c.l.b16 %v378
        %v937 = vunpack.c.h.b16 %v378
        %v938 = vunpack.c.l.b16 %v379
        %v939 = vunpack.c.h.b16 %v379
        %v940 = vunpack.c.l.b16 %v380
        %v941 = vunpack.c.h.b16 %v380
        %v942 = vunpack.c.l.b16 %v381
        %v943 = vunpack.c.h.b16 %v381
        %v944 = vunpack.c.l.b16 %v382
        %v945 = vunpack.c.h.b16 %v382
        %v946 = vunpack.c.l.b16 %v383
        %v947 = vunpack.c.h.b16 %v383
        %v948 = vunpack.c.l.b16 %v384
        %v949 = vunpack.c.h.b16 %v384
        %v950 = vunpack.c.l.b16 %v385
        %v951 = vunpack.c.h.b16 %v385
        %v952 = vunpack.c.l.b16 %v386
        %v953 = vunpack.c.h.b16 %v386
        %v954 = vunpack.c.l.b16 %v387
        %v955 = vunpack.c.h.b16 %v387
        %v956 = vunpack.c.l.b16 %v388
        %v957 = vunpack.c.h.b16 %v388
        %v958 = vunpack.c.l.b16 %v389
        %v959 = vunpack.c.h.b16 %v389
        %v960 = vunpack.c.l.b16 %v390
        %v961 = vunpack.c.h.b16 %v390
        %v962 = vunpack.c.l.b16 %v391
        %v963 = vunpack.c.h.b16 %v391
        %v964 = vunpack.c.l.b16 %v392
        %v965 = vunpack.c.h.b16 %v392
        %v966 = vunpack.c.l.b16 %v393
        %v967 = vunpack.c.h.b16 %v393
        %v968 = vunpack.c.l.b16 %v394
        %v969 = vunpack.c.h.b16 %v394
        %v970 = vunpack.c.l.b16 %v395
        %v971 = vunpack.c.h.b16 %v395
        %v972 = vunpack.c.l.b16 %v396
        %v973 = vunpack.c.h.b16 %v396
        %v974 = vunpack.c.l.b16 %v397
        %v975 = vunpack.c.h.b16 %v397
        %v976 = vunpack.c.l.b16 %v398
        %v977 = vunpack.c.h.b16 %v398
        %v978 = vunpack.c.l.b16 %v399
        %v979 = vunpack.c.h.b16 %v399
        %v980 = vunpack.c.l.b16 %v400
        %v981 = vunpack.c.h.b16 %v400
        %v982 = vunpack.c.l.b16 %v401
        %v983 = vunpack.c.h.b16 %v401
        %v984 = vunpack.c.l.b16 %v402
        %v985 = vunpack.c.h.b16 %v402
        %v986 = vunpack.c.l.b16 %v403
        %v987 = vunpack.c.h.b16 %v403
        %v988 = vunpack.c.l.b16 %v404
        %v989 = vunpack.c.h.b16 %v404
        %v990 = vunpack.c.l.b16 %v405
        %v991 = vunpack.c.h.b16 %v405
        %v992 = vunpack.c.l.b16 %v406
        %v993 = vunpack.c.h.b16 %v406
        %v994 = vunpack.c.l.b16 %v407
        %v995 = vunpack.c.h.b16 %v407
        %v996 = vunpack.c.l.b16 %v408
        %v997 = vunpack.c.h.b16 %v408
        %v998 = vunpack.c.l.b16 %v409
        %v999 = vunpack.c.h.b16 %v409
        %v1000 = vunpack.c.l.b16 %v410
        %v1001 = vunpack.c.h.b16 %v410
        %v1002 = vunpack.c.l.b16 %v411
        %v1003 = vunpack.c.h.b16 %v411
        %v1004 = vunpack.c.l.b16 %v412
        %v1005 = vunpack.c.h.b16 %v412
        %v1006 = vunpack.c.l.b16 %v413
        %v1007 = vunpack.c.h.b16 %v413
        %v1008 = vunpack.c.l.b16 %v414
        %v1009 = vunpack.c.h.b16 %v414
        %v1010 = vunpack.c.l.b16 %v415
        %v1011 = vunpack.c.h.b16 %v415
        %v1012 = vunpack.c.l.b16 %v416
        %v1013 = vunpack.c.h.b16 %v416
        %v1014 = vunpack.c.l.b16 %v417
        %v1015 = vunpack.c.h.b16 %v417
        %v1016 = vunpack.c.l.b16 %v418
        %v1017 = vunpack.c.h.b16 %v418
        %v1018 = vunpack.c.l.b16 %v419
        %v1019 = vunpack.c.h.b16 %v419
        %v1020 = vunpack.c.l.b16 %v420
        %v1021 = vunpack.c.h.b16 %v420
        %v1022 = vunpack.c.l.b16 %v421
        %v1023 = vunpack.c.h.b16 %v421
        %v1024 = vunpack.c.l.b16 %v422
        %v1025 = vunpack.c.h.b16 %v422
        %v1026 = vunpack.c.l.b16 %v423
        %v1027 = vunpack.c.h.b16 %v423
        %v1028 = vunpack.c.l.b16 %v424
        %v1029 = vunpack.c.h.b16 %v424
        %v1030 = vunpack.c.l.b16 %v425
        %v1031 = vunpack.c.h.b16 %v425
        %v1032 = vunpack.c.l.b16 %v426
        %v1033 = vunpack.c.h.b16 %v426
        %v1034 = vunpack.c.l.b16 %v427
        %v1035 = vunpack.c.h.b16 %v427
        %v1036 = vunpack.c.l.b16 %v428
        %v1037 = vunpack.c.h.b16 %v428
        %v1038 = vunpack.c.l.b16 %v429
        %v1039 = vunpack.c.h.b16 %v429
        %v1040 = vunpack.c.l.b16 %v430
        %v1041 = vunpack.c.h.b16 %v430
        %v1042 = vunpack.c.l.b16 %v431
        %v1043 = vunpack.c.h.b16 %v431
        %v1044 = vunpack.c.l.b16 %v432
        %v1045 = vunpack.c.h.b16 %v432
        %v1046 = vunpack.c.l.b16 %v433
        %v1047 = vunpack.c.h.b16 %v433
        %v1048 = vunpack.c.l.b16 %v434
        %v1049 = vunpack.c.h.b16 %v434
        %v1050 = vunpack.c.l.b16 %v435
        %v1051 = vunpack.c.h.b16 %v435
        %v1052 = vunpack.c.l.b16 %v436
        %v1053 = vunpack.c.h.b16 %v436
        %v1054 = vunpack.c.l.b16 %v437
        %v1055 = vunpack.c.h.b16 %v437
        %v1056 = vunpack.c.l.b16 %v438
        %v1057 = vunpack.c.h.b16 %v438
        %v1058 = vunpack.c.l.b16 %v439
        %v1059 = vunpack.c.h.b16 %v439
        %v1060 = vunpack.c.l.b16 %v440
        %v1061 = vunpack.c.h.b16 %v440
        %v1062 = vunpack.c.l.b16 %v441
        %v1063 = vunpack.c.h.b16 %v441
        %v1064 = vunpack.c.l.b16 %v442
        %v1065 = vunpack.c.h.b16 %v442
        %v1066 = vunpack.c.l.b16 %v443
        %v1067 = vunpack.c.h.b16 %v443
        %v1068 = vunpack.c.l.b16 %v444
        %v1069 = vunpack.c.h.b16 %v444
        %v1070 = vunpack.c.l.b16 %v445
        %v1071 = vunpack.c.h.b16 %v445
        %v1072 = vunpack.c.l.b16 %v446
        %v1073 = vunpack.c.h.b16 %v446
        %v1074 = vunpack.c.l.b16 %v447
        %v1075 = vunpack.c.h.b16 %v447
        %v1076 = vunpack.c.l.b16 %v448
        %v1077 = vunpack.c.h.b16 %v448
        %v1078 = vunpack.c.l.b16 %v449
        %v1079 = vunpack.c.h.b16 %v449
        %v1080 = vunpack.c.l.b16 %v450
        %v1081 = vunpack.c.h.b16 %v450
        %v1082 = vunpack.c.l.b16 %v451
        %v1083 = vunpack.c.h.b16 %v451
        %v1084 = vunpack.c.l.b16 %v452
        %v1085 = vunpack.c.h.b16 %v452
        %v1086 = vunpack.c.l.b16 %v453
        %v1087 = vunpack.c.h.b16 %v453
        %v1088 = vunpack.c.l.b16 %v454
        %v1089 = vunpack.c.h.b16 %v454
        %v1090 = vunpack.c.l.b16 %v455
        %v1091 = vunpack.c.h.b16 %v455
        %v1092 = vunpack.c.l.b16 %v456
        %v1093 = vunpack.c.h.b16 %v456
        %v1094 = vunpack.c.l.b16 %v457
        %v1095 = vunpack.c.h.b16 %v457
        %v1096 = vunpack.c.l.b16 %v458
        %v1097 = vunpack.c.h.b16 %v458
        %v1098 = vunpack.c.l.b16 %v459
        %v1099 = vunpack.c.h.b16 %v459
        %v1100 = vunpack.c.l.b16 %v460
        %v1101 = vunpack.c.h.b16 %v460
        %v1102 = vunpack.c.l.b16 %v461
        %v1103 = vunpack.c.h.b16 %v461
        %v1104 = vunpack.c.l.b16 %v462
        %v1105 = vunpack.c.h.b16 %v462
        %v1106 = vunpack.c.l.b16 %v463
        %v1107 = vunpack.c.h.b16 %v463
        %v1108 = vunpack.c.l.b16 %v464
        %v1109 = vunpack.c.h.b16 %v464
        %v1110 = vunpack.c.l.b16 %v465
        %v1111 = vunpack.c.h.b16 %v465
        %v1112 = vunpack.c.l.b16 %v466
        %v1113 = vunpack.c.h.b16 %v466
        %v1114 = vunpack.c.l.b16 %v467
        %v1115 = vunpack.c.h.b16 %v467
        %v1116 = vpack.c.b16 %v926, %v924
        %v1117 = vpack.c.b16 %v927, %v925
        %v1118 = vpack.c.b16 %v930, %v928
        %v1119 = vpack.c.b16 %v931, %v929
        %v1120 = vpack.c.b16 %v934, %v932
        %v1121 = vpack.c.b16 %v935, %v933
        %v1122 = vpack.c.b16 %v938, %v936
        %v1123 = vpack.c.b16 %v939, %v937
        %v1124 = vpack.c.b16 %v942, %v940
        %v1125 = vpack.c.b16 %v943, %v941
        %v1126 = vpack.c.b16 %v946, %v944
        %v1127 = vpack.c.b16 %v947, %v945
        %v1128 = vpack.c.b16 %v950, %v948
        %v1129 = vpack.c.b16 %v951, %v949
        %v1130 = vpack.c.b16 %v954, %v952
        %v1131 = vpack.c.b16 %v955, %v953
        %v1132 = vpack.c.b16 %v958, %v956
        %v1133 = vpack.c.b16 %v959, %v957
        %v1134 = vpack.c.b16 %v962, %v960
        %v1135 = vpack.c.b16 %v963, %v961
        %v1136 = vpack.c.b16 %v966, %v964
        %v1137 = vpack.c.b16 %v967, %v965
        %v1138 = vpack.c.b16 %v970, %v968
        %v1139 = vpack.c.b16 %v971, %v969
        %v1140 = vpack.c.b16 %v974, %v972
        %v1141 = vpack.c.b16 %v975, %v973
        %v1142 = vpack.c.b16 %v978, %v976
        %v1143 = vpack.c.b16 %v979, %v977
        %v1144 = vpack.c.b16 %v982, %v980
        %v1145 = vpack.c.b16 %v983, %v981
        %v1146 = vpack.c.b16 %v986, %v984
        %v1147 = vpack.c.b16 %v987, %v985
        %v1148 = vpack.c.b16 %v990, %v988
        %v1149 = vpack.c.b16 %v991, %v989
        %v1150 = vpack.c.b16 %v994, %v992
        %v1151 = vpack.c.b16 %v995, %v993
        %v1152 = vpack.c.b16 %v998, %v996
        %v1153 = vpack.c.b16 %v999, %v997
        %v1154 = vpack.c.b16 %v1002, %v1000
        %v1155 = vpack.c.b16 %v1003, %v1001
        %v1156 = vpack.c.b16 %v1006, %v1004
        %v1157 = vpack.c.b16 %v1007, %v1005
        %v1158 = vpack.c.b16 %v1010, %v1008
        %v1159 = vpack.c.b16 %v1011, %v1009
        %v1160 = vpack.c.b16 %v1014, %v1012
        %v1161 = vpack.c.b16 %v1015, %v1013
        %v1162 = vpack.c.b16 %v1018, %v1016
        %v1163 = vpack.c.b16 %v1019, %v1017
        %v1164 = vpack.c.b16 %v1022, %v1020
        %v1165 = vpack.c.b16 %v1023, %v1021
        %v1166 = vpack.c.b16 %v1026, %v1024
        %v1167 = vpack.c.b16 %v1027, %v1025
        %v1168 = vpack.c.b16 %v1030, %v1028
        %v1169 = vpack.c.b16 %v1031, %v1029
        %v1170 = vpack.c.b16 %v1034, %v1032
        %v1171 = vpack.c.b16 %v1035, %v1033
        %v1172 = vpack.c.b16 %v1038, %v1036
        %v1173 = vpack.c.b16 %v1039, %v1037
        %v1174 = vpack.c.b16 %v1042, %v1040
        %v1175 = vpack.c.b16 %v1043, %v1041
        %v1176 = vpack.c.b16 %v1046, %v1044
        %v1177 = vpack.c.b16 %v1047, %v1045
        %v1178 = vpack.c.b16 %v1050, %v1048
        %v1179 = vpack.c.b16 %v1051, %v1049
        %v1180 = vpack.c.b16 %v1054, %v1052
        %v1181 = vpack.c.b16 %v1055, %v1053
        %v1182 = vpack.c.b16 %v1058, %v1056
        %v1183 = vpack.c.b16 %v1059, %v1057
        %v1184 = vpack.c.b16 %v1062, %v1060
        %v1185 = vpack.c.b16 %v1063, %v1061
        %v1186 = vpack.c.b16 %v1066, %v1064
        %v1187 = vpack.c.b16 %v1067, %v1065
        %v1188 = vpack.c.b16 %v1070, %v1068
        %v1189 = vpack.c.b16 %v1071, %v1069
        %v1190 = vpack.c.b16 %v1074, %v1072
        %v1191 = vpack.c.b16 %v1075, %v1073
        %v1192 = vpack.c.b16 %v1078, %v1076
        %v1193 = vpack.c.b16 %v1079, %v1077
        %v1194 = vpack.c.b16 %v1082, %v1080
        %v1195 = vpack.c.b16 %v1083, %v1081
        %v1196 = vpack.c.b16 %v1086, %v1084
        %v1197 = vpack.c.b16 %v1087, %v1085
        %v1198 = vpack.c.b16 %v1090, %v1088
        %v1199 = vpack.c.b16 %v1091, %v1089
        %v1200 = vpack.c.b16 %v1094, %v1092
        %v1201 = vpack.c.b16 %v1095, %v1093
        %v1202 = vpack.c.b16 %v1098, %v1096
        %v1203 = vpack.c.b16 %v1099, %v1097
        %v1204 = vpack.c.b16 %v1102, %v1100
        %v1205 = vpack.c.b16 %v1103, %v1101
        %v1206 = vpack.c.b16 %v1106, %v1104
        %v1207 = vpack.c.b16 %v1107, %v1105
        %v1208 = vpack.c.b16 %v1110, %v1108
        %v1209 = vpack.c.b16 %v1111, %v1109
        %v1210 = vpack.c.b16 %v1114, %v1112
        %v1211 = vpack.c.b16 %v1115, %v1113
        %1308 = vmatprep.subr.bf16.mxu0 %v1131
        %1309 = vmatpush1.bf16.msra.mxu0 %v1130
        %1310 = vmatprep.subr.bf16.mxu0 %v1129
        %1311 = vmatpush1.bf16.msra.mxu0 %v1128
        %1312 = vmatprep.subr.bf16.mxu0 %v1127
        %1313 = vmatpush1.bf16.msra.mxu0 %v1126
        %1314 = vmatprep.subr.bf16.mxu0 %v1125
        %1315 = vmatpush1.bf16.msra.mxu0 %v1124
        %1316 = vmatprep.subr.bf16.mxu0 %v1123
        %1317 = vmatpush1.bf16.msra.mxu0 %v1122
        %1318 = vmatprep.subr.bf16.mxu0 %v1121
        %1319 = vmatpush1.bf16.msra.mxu0 %v1120
        %1320 = vmatprep.subr.bf16.mxu0 %v1119
        %1321 = vmatpush1.bf16.msra.mxu0 %v1118
        %1322 = vmatprep.subr.bf16.mxu0 %v1117
        %1323 = vmatpush1.bf16.msra.mxu0 %v1116
        %1324 = vmatprep.subr.bf16.mxu0 %v1147
        %1325 = vmatpush2.bf16.msra.mxu0 %v1146
        %1326 = vmatprep.subr.bf16.mxu0 %v1145
        %1327 = vmatpush2.bf16.msra.mxu0 %v1144
        %1328 = vmatprep.subr.bf16.mxu0 %v1143
        %1329 = vmatpush2.bf16.msra.mxu0 %v1142
        %1330 = vmatprep.subr.bf16.mxu0 %v1141
        %1331 = vmatpush2.bf16.msra.mxu0 %v1140
        %1332 = vmatprep.subr.bf16.mxu0 %v1139
        %1333 = vmatpush2.bf16.msra.mxu0 %v1138
        %1334 = vmatprep.subr.bf16.mxu0 %v1137
        %1335 = vmatpush2.bf16.msra.mxu0 %v1136
        %1336 = vmatprep.subr.bf16.mxu0 %v1135
        %1337 = vmatpush2.bf16.msra.mxu0 %v1134
        %1338 = vmatprep.subr.bf16.mxu0 %v1133
        %1339 = vmatpush2.bf16.msra.mxu0 %v1132
        %1340 = vmatprep.mubr.bf16.mxu0 %v685
        %1341 = vmatmul.mubr.bf16.gmra.mxu0 %v684
        %v1342 = vpop.f32.mrf.mxu0
        %v1343 = vadd.f32 0.0, %v1342
        %v1344 = vpop.f32.mrf.mxu0
        %v1345 = vadd.f32 0.0, %v1344
        %v1346 = vpop.f32.mrf.mxu0
        %v1347 = vadd.f32 0.0, %v1346
        %v1348 = vpop.f32.mrf.mxu0
        %v1349 = vadd.f32 0.0, %v1348
        %1350 = vmatprep.mubr.bf16.mxu0 %v691
        %1351 = vmatmul.mubr.bf16.gmra.mxu0 %v690
        %v1352 = vpop.f32.mrf.mxu0
        %v1353 = vadd.f32 0.0, %v1352
        %v1354 = vpop.f32.mrf.mxu0
        %v1355 = vadd.f32 0.0, %v1354
        %v1356 = vpop.f32.mrf.mxu0
        %v1357 = vadd.f32 0.0, %v1356
        %v1358 = vpop.f32.mrf.mxu0
        %v1359 = vadd.f32 0.0, %v1358
        %1360 = vmatprep.mubr.bf16.mxu0 %v697
        %1361 = vmatmul.mubr.bf16.gmra.mxu0 %v696
        %v1362 = vpop.f32.mrf.mxu0
        %v1363 = vadd.f32 0.0, %v1362
        %v1364 = vpop.f32.mrf.mxu0
        %v1365 = vadd.f32 0.0, %v1364
        %v1366 = vpop.f32.mrf.mxu0
        %v1367 = vadd.f32 0.0, %v1366
        %v1368 = vpop.f32.mrf.mxu0
        %v1369 = vadd.f32 0.0, %v1368
        %1370 = vmatprep.mubr.bf16.mxu0 %v703
        %1371 = vmatmul.mubr.bf16.gmra.mxu0 %v702
        %v1372 = vpop.f32.mrf.mxu0
        %v1373 = vadd.f32 0.0, %v1372
        %v1374 = vpop.f32.mrf.mxu0
        %v1375 = vadd.f32 0.0, %v1374
        %v1376 = vpop.f32.mrf.mxu0
        %v1377 = vadd.f32 0.0, %v1376
        %v1378 = vpop.f32.mrf.mxu0
        %v1379 = vadd.f32 0.0, %v1378
        %1380 = vmatprep.mubr.bf16.mxu0 %v709
        %1381 = vmatmul.mubr.bf16.gmra.mxu0 %v708
        %v1382 = vpop.f32.mrf.mxu0
        %v1383 = vadd.f32 0.0, %v1382
        %v1384 = vpop.f32.mrf.mxu0
        %v1385 = vadd.f32 0.0, %v1384
        %v1386 = vpop.f32.mrf.mxu0
        %v1387 = vadd.f32 0.0, %v1386
        %v1388 = vpop.f32.mrf.mxu0
        %v1389 = vadd.f32 0.0, %v1388
        %1390 = vmatprep.mubr.bf16.mxu0 %v715
        %1391 = vmatmul.mubr.bf16.gmra.mxu0 %v714
        %v1392 = vpop.f32.mrf.mxu0
        %v1393 = vadd.f32 0.0, %v1392
        %v1394 = vpop.f32.mrf.mxu0
        %v1395 = vadd.f32 0.0, %v1394
        %v1396 = vpop.f32.mrf.mxu0
        %v1397 = vadd.f32 0.0, %v1396
        %v1398 = vpop.f32.mrf.mxu0
        %v1399 = vadd.f32 0.0, %v1398
        %1400 = vmatprep.mubr.bf16.mxu0 %v721
        %1401 = vmatmul.mubr.bf16.gmra.mxu0 %v720
        %v1402 = vpop.f32.mrf.mxu0
        %v1403 = vadd.f32 0.0, %v1402
        %v1404 = vpop.f32.mrf.mxu0
        %v1405 = vadd.f32 0.0, %v1404
        %v1406 = vpop.f32.mrf.mxu0
        %v1407 = vadd.f32 0.0, %v1406
        %v1408 = vpop.f32.mrf.mxu0
        %v1409 = vadd.f32 0.0, %v1408
        %1410 = vmatprep.mubr.bf16.mxu0 %v727
        %1411 = vmatmul.mubr.bf16.gmra.mxu0 %v726
        %v1412 = vpop.f32.mrf.mxu0
        %v1413 = vadd.f32 0.0, %v1412
        %v1414 = vpop.f32.mrf.mxu0
        %v1415 = vadd.f32 0.0, %v1414
        %v1416 = vpop.f32.mrf.mxu0
        %v1417 = vadd.f32 0.0, %v1416
        %v1418 = vpop.f32.mrf.mxu0
        %v1419 = vadd.f32 0.0, %v1418
        %1420 = vmatprep.mubr.bf16.mxu0 %v733
        %1421 = vmatmul.mubr.bf16.gmra.mxu0 %v732
        %v1422 = vpop.f32.mrf.mxu0
        %v1423 = vadd.f32 0.0, %v1422
        %v1424 = vpop.f32.mrf.mxu0
        %v1425 = vadd.f32 0.0, %v1424
        %v1426 = vpop.f32.mrf.mxu0
        %v1427 = vadd.f32 0.0, %v1426
        %v1428 = vpop.f32.mrf.mxu0
        %v1429 = vadd.f32 0.0, %v1428
        %1430 = vmatprep.mubr.bf16.mxu0 %v739
        %1431 = vmatmul.mubr.bf16.gmra.mxu0 %v738
        %v1432 = vpop.f32.mrf.mxu0
        %v1433 = vadd.f32 0.0, %v1432
        %v1434 = vpop.f32.mrf.mxu0
        %v1435 = vadd.f32 0.0, %v1434
        %v1436 = vpop.f32.mrf.mxu0
        %v1437 = vadd.f32 0.0, %v1436
        %v1438 = vpop.f32.mrf.mxu0
        %v1439 = vadd.f32 0.0, %v1438
        %1440 = vmatprep.mubr.bf16.mxu0 %v745
        %1441 = vmatmul.mubr.bf16.gmra.mxu0 %v744
        %v1442 = vpop.f32.mrf.mxu0
        %v1443 = vadd.f32 0.0, %v1442
        %v1444 = vpop.f32.mrf.mxu0
        %v1445 = vadd.f32 0.0, %v1444
        %v1446 = vpop.f32.mrf.mxu0
        %v1447 = vadd.f32 0.0, %v1446
        %v1448 = vpop.f32.mrf.mxu0
        %v1449 = vadd.f32 0.0, %v1448
        %1450 = vmatprep.mubr.bf16.mxu0 %v751
        %1451 = vmatmul.mubr.bf16.gmra.mxu0 %v750
        %v1452 = vpop.f32.mrf.mxu0
        %v1453 = vadd.f32 0.0, %v1452
        %v1454 = vpop.f32.mrf.mxu0
        %v1455 = vadd.f32 0.0, %v1454
        %v1456 = vpop.f32.mrf.mxu0
        %v1457 = vadd.f32 0.0, %v1456
        %v1458 = vpop.f32.mrf.mxu0
        %v1459 = vadd.f32 0.0, %v1458
        %1460 = vdwg.mxu0
        %1461 = vmatprep.subr.bf16.mxu0 %v1163
        %1462 = vmatpush1.bf16.msra.mxu0 %v1162
        %1463 = vmatprep.subr.bf16.mxu0 %v1161
        %1464 = vmatpush1.bf16.msra.mxu0 %v1160
        %1465 = vmatprep.subr.bf16.mxu0 %v1159
        %1466 = vmatpush1.bf16.msra.mxu0 %v1158
        %1467 = vmatprep.subr.bf16.mxu0 %v1157
        %1468 = vmatpush1.bf16.msra.mxu0 %v1156
        %1469 = vmatprep.subr.bf16.mxu0 %v1155
        %1470 = vmatpush1.bf16.msra.mxu0 %v1154
        %1471 = vmatprep.subr.bf16.mxu0 %v1153
        %1472 = vmatpush1.bf16.msra.mxu0 %v1152
        %1473 = vmatprep.subr.bf16.mxu0 %v1151
        %1474 = vmatpush1.bf16.msra.mxu0 %v1150
        %1475 = vmatprep.subr.bf16.mxu0 %v1149
        %1476 = vmatpush1.bf16.msra.mxu0 %v1148
        %1477 = vmatprep.subr.bf16.mxu0 %v1179
        %1478 = vmatpush2.bf16.msra.mxu0 %v1178
        %1479 = vmatprep.subr.bf16.mxu0 %v1177
        %1480 = vmatpush2.bf16.msra.mxu0 %v1176
        %1481 = vmatprep.subr.bf16.mxu0 %v1175
        %1482 = vmatpush2.bf16.msra.mxu0 %v1174
        %1483 = vmatprep.subr.bf16.mxu0 %v1173
        %1484 = vmatpush2.bf16.msra.mxu0 %v1172
        %1485 = vmatprep.subr.bf16.mxu0 %v1171
        %1486 = vmatpush2.bf16.msra.mxu0 %v1170
        %1487 = vmatprep.subr.bf16.mxu0 %v1169
        %1488 = vmatpush2.bf16.msra.mxu0 %v1168
        %1489 = vmatprep.subr.bf16.mxu0 %v1167
        %1490 = vmatpush2.bf16.msra.mxu0 %v1166
        %1491 = vmatprep.subr.bf16.mxu0 %v1165
        %1492 = vmatpush2.bf16.msra.mxu0 %v1164
        %1493 = vmatprep.mubr.bf16.mxu0 %v687
        %1494 = vmatmul.mubr.bf16.gmra.mxu0 %v686
        %v1495 = vpop.f32.mrf.mxu0
        %v1496 = vadd.f32 %v1343, %v1495
        %v1497 = vpop.f32.mrf.mxu0
        %v1498 = vadd.f32 %v1345, %v1497
        %v1499 = vpop.f32.mrf.mxu0
        %v1500 = vadd.f32 %v1347, %v1499
        %v1501 = vpop.f32.mrf.mxu0
        %v1502 = vadd.f32 %v1349, %v1501
        %1503 = vmatprep.mubr.bf16.mxu0 %v693
        %1504 = vmatmul.mubr.bf16.gmra.mxu0 %v692
        %v1505 = vpop.f32.mrf.mxu0
        %v1506 = vadd.f32 %v1353, %v1505
        %v1507 = vpop.f32.mrf.mxu0
        %v1508 = vadd.f32 %v1355, %v1507
        %v1509 = vpop.f32.mrf.mxu0
        %v1510 = vadd.f32 %v1357, %v1509
        %v1511 = vpop.f32.mrf.mxu0
        %v1512 = vadd.f32 %v1359, %v1511
        %1513 = vmatprep.mubr.bf16.mxu0 %v699
        %1514 = vmatmul.mubr.bf16.gmra.mxu0 %v698
        %v1515 = vpop.f32.mrf.mxu0
        %v1516 = vadd.f32 %v1363, %v1515
        %v1517 = vpop.f32.mrf.mxu0
        %v1518 = vadd.f32 %v1365, %v1517
        %v1519 = vpop.f32.mrf.mxu0
        %v1520 = vadd.f32 %v1367, %v1519
        %v1521 = vpop.f32.mrf.mxu0
        %v1522 = vadd.f32 %v1369, %v1521
        %1523 = vmatprep.mubr.bf16.mxu0 %v705
        %1524 = vmatmul.mubr.bf16.gmra.mxu0 %v704
        %v1525 = vpop.f32.mrf.mxu0
        %v1526 = vadd.f32 %v1373, %v1525
        %v1527 = vpop.f32.mrf.mxu0
        %v1528 = vadd.f32 %v1375, %v1527
        %v1529 = vpop.f32.mrf.mxu0
        %v1530 = vadd.f32 %v1377, %v1529
        %v1531 = vpop.f32.mrf.mxu0
        %v1532 = vadd.f32 %v1379, %v1531
        %1533 = vmatprep.mubr.bf16.mxu0 %v711
        %1534 = vmatmul.mubr.bf16.gmra.mxu0 %v710
        %v1535 = vpop.f32.mrf.mxu0
        %v1536 = vadd.f32 %v1383, %v1535
        %v1537 = vpop.f32.mrf.mxu0
        %v1538 = vadd.f32 %v1385, %v1537
        %v1539 = vpop.f32.mrf.mxu0
        %v1540 = vadd.f32 %v1387, %v1539
        %v1541 = vpop.f32.mrf.mxu0
        %v1542 = vadd.f32 %v1389, %v1541
        %1543 = vmatprep.mubr.bf16.mxu0 %v717
        %1544 = vmatmul.mubr.bf16.gmra.mxu0 %v716
        %v1545 = vpop.f32.mrf.mxu0
        %v1546 = vadd.f32 %v1393, %v1545
        %v1547 = vpop.f32.mrf.mxu0
        %v1548 = vadd.f32 %v1395, %v1547
        %v1549 = vpop.f32.mrf.mxu0
        %v1550 = vadd.f32 %v1397, %v1549
        %v1551 = vpop.f32.mrf.mxu0
        %v1552 = vadd.f32 %v1399, %v1551
        %1553 = vmatprep.mubr.bf16.mxu0 %v723
        %1554 = vmatmul.mubr.bf16.gmra.mxu0 %v722
        %v1555 = vpop.f32.mrf.mxu0
        %v1556 = vadd.f32 %v1403, %v1555
        %v1557 = vpop.f32.mrf.mxu0
        %v1558 = vadd.f32 %v1405, %v1557
        %v1559 = vpop.f32.mrf.mxu0
        %v1560 = vadd.f32 %v1407, %v1559
        %v1561 = vpop.f32.mrf.mxu0
        %v1562 = vadd.f32 %v1409, %v1561
        %1563 = vmatprep.mubr.bf16.mxu0 %v729
        %1564 = vmatmul.mubr.bf16.gmra.mxu0 %v728
        %v1565 = vpop.f32.mrf.mxu0
        %v1566 = vadd.f32 %v1413, %v1565
        %v1567 = vpop.f32.mrf.mxu0
        %v1568 = vadd.f32 %v1415, %v1567
        %v1569 = vpop.f32.mrf.mxu0
        %v1570 = vadd.f32 %v1417, %v1569
        %v1571 = vpop.f32.mrf.mxu0
        %v1572 = vadd.f32 %v1419, %v1571
        %1573 = vmatprep.mubr.bf16.mxu0 %v735
        %1574 = vmatmul.mubr.bf16.gmra.mxu0 %v734
        %v1575 = vpop.f32.mrf.mxu0
        %v1576 = vadd.f32 %v1423, %v1575
        %v1577 = vpop.f32.mrf.mxu0
        %v1578 = vadd.f32 %v1425, %v1577
        %v1579 = vpop.f32.mrf.mxu0
        %v1580 = vadd.f32 %v1427, %v1579
        %v1581 = vpop.f32.mrf.mxu0
        %v1582 = vadd.f32 %v1429, %v1581
        %1583 = vmatprep.mubr.bf16.mxu0 %v741
        %1584 = vmatmul.mubr.bf16.gmra.mxu0 %v740
        %v1585 = vpop.f32.mrf.mxu0
        %v1586 = vadd.f32 %v1433, %v1585
        %v1587 = vpop.f32.mrf.mxu0
        %v1588 = vadd.f32 %v1435, %v1587
        %v1589 = vpop.f32.mrf.mxu0
        %v1590 = vadd.f32 %v1437, %v1589
        %v1591 = vpop.f32.mrf.mxu0
        %v1592 = vadd.f32 %v1439, %v1591
        %1593 = vmatprep.mubr.bf16.mxu0 %v747
        %1594 = vmatmul.mubr.bf16.gmra.mxu0 %v746
        %v1595 = vpop.f32.mrf.mxu0
        %v1596 = vadd.f32 %v1443, %v1595
        %v1597 = vpop.f32.mrf.mxu0
        %v1598 = vadd.f32 %v1445, %v1597
        %v1599 = vpop.f32.mrf.mxu0
        %v1600 = vadd.f32 %v1447, %v1599
        %v1601 = vpop.f32.mrf.mxu0
        %v1602 = vadd.f32 %v1449, %v1601
        %1603 = vmatprep.mubr.bf16.mxu0 %v753
        %1604 = vmatmul.mubr.bf16.gmra.mxu0 %v752
        %v1605 = vpop.f32.mrf.mxu0
        %v1606 = vadd.f32 %v1453, %v1605
        %v1607 = vpop.f32.mrf.mxu0
        %v1608 = vadd.f32 %v1455, %v1607
        %v1609 = vpop.f32.mrf.mxu0
        %v1610 = vadd.f32 %v1457, %v1609
        %v1611 = vpop.f32.mrf.mxu0
        %v1612 = vadd.f32 %v1459, %v1611
        %1613 = vdwg.mxu0
        %1614 = vmatprep.subr.bf16.mxu0 %v1195
        %1615 = vmatpush1.bf16.msra.mxu0 %v1194
        %1616 = vmatprep.subr.bf16.mxu0 %v1193
        %1617 = vmatpush1.bf16.msra.mxu0 %v1192
        %1618 = vmatprep.subr.bf16.mxu0 %v1191
        %1619 = vmatpush1.bf16.msra.mxu0 %v1190
        %1620 = vmatprep.subr.bf16.mxu0 %v1189
        %1621 = vmatpush1.bf16.msra.mxu0 %v1188
        %1622 = vmatprep.subr.bf16.mxu0 %v1187
        %1623 = vmatpush1.bf16.msra.mxu0 %v1186
        %1624 = vmatprep.subr.bf16.mxu0 %v1185
        %1625 = vmatpush1.bf16.msra.mxu0 %v1184
        %1626 = vmatprep.subr.bf16.mxu0 %v1183
        %1627 = vmatpush1.bf16.msra.mxu0 %v1182
        %1628 = vmatprep.subr.bf16.mxu0 %v1181
        %1629 = vmatpush1.bf16.msra.mxu0 %v1180
        %1630 = vmatprep.subr.bf16.mxu0 %v1211
        %1631 = vmatpush2.bf16.msra.mxu0 %v1210
        %1632 = vmatprep.subr.bf16.mxu0 %v1209
        %1633 = vmatpush2.bf16.msra.mxu0 %v1208
        %1634 = vmatprep.subr.bf16.mxu0 %v1207
        %1635 = vmatpush2.bf16.msra.mxu0 %v1206
        %1636 = vmatprep.subr.bf16.mxu0 %v1205
        %1637 = vmatpush2.bf16.msra.mxu0 %v1204
        %1638 = vmatprep.subr.bf16.mxu0 %v1203
        %1639 = vmatpush2.bf16.msra.mxu0 %v1202
        %1640 = vmatprep.subr.bf16.mxu0 %v1201
        %1641 = vmatpush2.bf16.msra.mxu0 %v1200
        %1642 = vmatprep.subr.bf16.mxu0 %v1199
        %1643 = vmatpush2.bf16.msra.mxu0 %v1198
        %1644 = vmatprep.subr.bf16.mxu0 %v1197
        %1645 = vmatpush2.bf16.msra.mxu0 %v1196
        %1646 = vmatprep.mubr.bf16.mxu0 %v689
        %1647 = vmatmul.mubr.bf16.gmra.mxu0 %v688
        %v1648 = vpop.f32.mrf.mxu0
        %v1649 = vadd.f32 %v1496, %v1648
        %v1650 = vpop.f32.mrf.mxu0
        %v1651 = vadd.f32 %v1498, %v1650
        %v1652 = vpop.f32.mrf.mxu0
        %v1653 = vadd.f32 %v1500, %v1652
        %v1654 = vpop.f32.mrf.mxu0
        %v1655 = vadd.f32 %v1502, %v1654
        %1656 = vmatprep.mubr.bf16.mxu0 %v695
        %1657 = vmatmul.mubr.bf16.gmra.mxu0 %v694
        %v1658 = vpop.f32.mrf.mxu0
        %v1659 = vadd.f32 %v1506, %v1658
        %v1660 = vpop.f32.mrf.mxu0
        %v1661 = vadd.f32 %v1508, %v1660
        %v1662 = vpop.f32.mrf.mxu0
        %v1663 = vadd.f32 %v1510, %v1662
        %v1664 = vpop.f32.mrf.mxu0
        %v1665 = vadd.f32 %v1512, %v1664
        %1666 = vmatprep.mubr.bf16.mxu0 %v701
        %1667 = vmatmul.mubr.bf16.gmra.mxu0 %v700
        %v1668 = vpop.f32.mrf.mxu0
        %v1669 = vadd.f32 %v1516, %v1668
        %v1670 = vpop.f32.mrf.mxu0
        %v1671 = vadd.f32 %v1518, %v1670
        %v1672 = vpop.f32.mrf.mxu0
        %v1673 = vadd.f32 %v1520, %v1672
        %v1674 = vpop.f32.mrf.mxu0
        %v1675 = vadd.f32 %v1522, %v1674
        %1676 = vmatprep.mubr.bf16.mxu0 %v707
        %1677 = vmatmul.mubr.bf16.gmra.mxu0 %v706
        %v1678 = vpop.f32.mrf.mxu0
        %v1679 = vadd.f32 %v1526, %v1678
        %v1680 = vpop.f32.mrf.mxu0
        %v1681 = vadd.f32 %v1528, %v1680
        %v1682 = vpop.f32.mrf.mxu0
        %v1683 = vadd.f32 %v1530, %v1682
        %v1684 = vpop.f32.mrf.mxu0
        %v1685 = vadd.f32 %v1532, %v1684
        %1686 = vmatprep.mubr.bf16.mxu0 %v713
        %1687 = vmatmul.mubr.bf16.gmra.mxu0 %v712
        %v1688 = vpop.f32.mrf.mxu0
        %v1689 = vadd.f32 %v1536, %v1688
        %v1690 = vpop.f32.mrf.mxu0
        %v1691 = vadd.f32 %v1538, %v1690
        %v1692 = vpop.f32.mrf.mxu0
        %v1693 = vadd.f32 %v1540, %v1692
        %v1694 = vpop.f32.mrf.mxu0
        %v1695 = vadd.f32 %v1542, %v1694
        %1696 = vmatprep.mubr.bf16.mxu0 %v719
        %1697 = vmatmul.mubr.bf16.gmra.mxu0 %v718
        %v1698 = vpop.f32.mrf.mxu0
        %v1699 = vadd.f32 %v1546, %v1698
        %v1700 = vpop.f32.mrf.mxu0
        %v1701 = vadd.f32 %v1548, %v1700
        %v1702 = vpop.f32.mrf.mxu0
        %v1703 = vadd.f32 %v1550, %v1702
        %v1704 = vpop.f32.mrf.mxu0
        %v1705 = vadd.f32 %v1552, %v1704
        %1706 = vmatprep.mubr.bf16.mxu0 %v725
        %1707 = vmatmul.mubr.bf16.gmra.mxu0 %v724
        %v1708 = vpop.f32.mrf.mxu0
        %v1709 = vadd.f32 %v1556, %v1708
        %v1710 = vpop.f32.mrf.mxu0
        %v1711 = vadd.f32 %v1558, %v1710
        %v1712 = vpop.f32.mrf.mxu0
        %v1713 = vadd.f32 %v1560, %v1712
        %v1714 = vpop.f32.mrf.mxu0
        %v1715 = vadd.f32 %v1562, %v1714
        %1716 = vmatprep.mubr.bf16.mxu0 %v731
        %1717 = vmatmul.mubr.bf16.gmra.mxu0 %v730
        %v1718 = vpop.f32.mrf.mxu0
        %v1719 = vadd.f32 %v1566, %v1718
        %v1720 = vpop.f32.mrf.mxu0
        %v1721 = vadd.f32 %v1568, %v1720
        %v1722 = vpop.f32.mrf.mxu0
        %v1723 = vadd.f32 %v1570, %v1722
        %v1724 = vpop.f32.mrf.mxu0
        %v1725 = vadd.f32 %v1572, %v1724
        %1726 = vmatprep.mubr.bf16.mxu0 %v737
        %1727 = vmatmul.mubr.bf16.gmra.mxu0 %v736
        %v1728 = vpop.f32.mrf.mxu0
        %v1729 = vadd.f32 %v1576, %v1728
        %v1730 = vpop.f32.mrf.mxu0
        %v1731 = vadd.f32 %v1578, %v1730
        %v1732 = vpop.f32.mrf.mxu0
        %v1733 = vadd.f32 %v1580, %v1732
        %v1734 = vpop.f32.mrf.mxu0
        %v1735 = vadd.f32 %v1582, %v1734
        %1736 = vmatprep.mubr.bf16.mxu0 %v743
        %1737 = vmatmul.mubr.bf16.gmra.mxu0 %v742
        %v1738 = vpop.f32.mrf.mxu0
        %v1739 = vadd.f32 %v1586, %v1738
        %v1740 = vpop.f32.mrf.mxu0
        %v1741 = vadd.f32 %v1588, %v1740
        %v1742 = vpop.f32.mrf.mxu0
        %v1743 = vadd.f32 %v1590, %v1742
        %v1744 = vpop.f32.mrf.mxu0
        %v1745 = vadd.f32 %v1592, %v1744
        %1746 = vmatprep.mubr.bf16.mxu0 %v749
        %1747 = vmatmul.mubr.bf16.gmra.mxu0 %v748
        %v1748 = vpop.f32.mrf.mxu0
        %v1749 = vadd.f32 %v1596, %v1748
        %v1750 = vpop.f32.mrf.mxu0
        %v1751 = vadd.f32 %v1598, %v1750
        %v1752 = vpop.f32.mrf.mxu0
        %v1753 = vadd.f32 %v1600, %v1752
        %v1754 = vpop.f32.mrf.mxu0
        %v1755 = vadd.f32 %v1602, %v1754
        %1756 = vmatprep.mubr.bf16.mxu0 %v755
        %1757 = vmatmul.mubr.bf16.gmra.mxu0 %v754
        %v1758 = vpop.f32.mrf.mxu0
        %v1759 = vadd.f32 %v1606, %v1758
        %v1760 = vpop.f32.mrf.mxu0
        %v1761 = vadd.f32 %v1608, %v1760
        %v1762 = vpop.f32.mrf.mxu0
        %v1763 = vadd.f32 %v1610, %v1762
        %v1764 = vpop.f32.mrf.mxu0
        %v1765 = vadd.f32 %v1612, %v1764
        %1766 = vdwg.mxu0
        %1767 = vst [vmem:[#allocation2] sm:$0xff] %v1649
        %1768 = vst [vmem:[#allocation2 + $0x8] sm:$0xff] %v1651
        %1769 = vst [vmem:[#allocation2 + $0x10] sm:$0xff] %v1653
        %1770 = vst [vmem:[#allocation2 + $0x18] sm:$0xff] %v1655
        %1771 = vst [vmem:[#allocation2 + $0x20] sm:$0xff] %v1659
        %1772 = vst [vmem:[#allocation2 + $0x28] sm:$0xff] %v1661
        %1773 = vst [vmem:[#allocation2 + $0x30] sm:$0xff] %v1663
        %1774 = vst [vmem:[#allocation2 + $0x38] sm:$0xff] %v1665
        %1775 = vst [vmem:[#allocation2 + $0x40] sm:$0xff] %v1669
        %1776 = vst [vmem:[#allocation2 + $0x48] sm:$0xff] %v1671
        %1777 = vst [vmem:[#allocation2 + $0x50] sm:$0xff] %v1673
        %1778 = vst [vmem:[#allocation2 + $0x58] sm:$0xff] %v1675
        %1779 = vst [vmem:[#allocation2 + $0x60] sm:$0xff] %v1679
        %1780 = vst [vmem:[#allocation2 + $0x68] sm:$0xff] %v1681
        %1781 = vst [vmem:[#allocation2 + $0x70] sm:$0xff] %v1683
        %1782 = vst [vmem:[#allocation2 + $0x78] sm:$0xff] %v1685
        %1783 = vst [vmem:[#allocation2 + $0x80] sm:$0xff] %v1689
        %1784 = vst [vmem:[#allocation2 + $0x88] sm:$0xff] %v1691
        %1785 = vst [vmem:[#allocation2 + $0x90] sm:$0xff] %v1693
        %1786 = vst [vmem:[#allocation2 + $0x98] sm:$0xff] %v1695
        %1787 = vst [vmem:[#allocation2 + $0xa0] sm:$0xff] %v1699
        %1788 = vst [vmem:[#allocation2 + $0xa8] sm:$0xff] %v1701
        %1789 = vst [vmem:[#allocation2 + $0xb0] sm:$0xff] %v1703
        %1790 = vst [vmem:[#allocation2 + $0xb8] sm:$0xff] %v1705
        %1791 = vst [vmem:[#allocation2 + $0xc0] sm:$0xff] %v1709
        %1792 = vst [vmem:[#allocation2 + $0xc8] sm:$0xff] %v1711
        %1793 = vst [vmem:[#allocation2 + $0xd0] sm:$0xff] %v1713
        %1794 = vst [vmem:[#allocation2 + $0xd8] sm:$0xff] %v1715
        %1795 = vst [vmem:[#allocation2 + $0xe0] sm:$0xff] %v1719
        %1796 = vst [vmem:[#allocation2 + $0xe8] sm:$0xff] %v1721
        %1797 = vst [vmem:[#allocation2 + $0xf0] sm:$0xff] %v1723
        %1798 = vst [vmem:[#allocation2 + $0xf8] sm:$0xff] %v1725
        %1799 = vst [vmem:[#allocation2 + $0x100] sm:$0xff] %v1729
        %1800 = vst [vmem:[#allocation2 + $0x108] sm:$0xff] %v1731
        %1801 = vst [vmem:[#allocation2 + $0x110] sm:$0xff] %v1733
        %1802 = vst [vmem:[#allocation2 + $0x118] sm:$0xff] %v1735
        %1803 = vst [vmem:[#allocation2 + $0x120] sm:$0xff] %v1739
        %1804 = vst [vmem:[#allocation2 + $0x128] sm:$0xff] %v1741
        %1805 = vst [vmem:[#allocation2 + $0x130] sm:$0xff] %v1743
        %1806 = vst [vmem:[#allocation2 + $0x138] sm:$0xff] %v1745
        %1807 = vst [vmem:[#allocation2 + $0x140] sm:$0xff] %v1749
        %1808 = vst [vmem:[#allocation2 + $0x148] sm:$0xff] %v1751
        %1809 = vst [vmem:[#allocation2 + $0x150] sm:$0xff] %v1753
        %1810 = vst [vmem:[#allocation2 + $0x158] sm:$0xff] %v1755
        %1811 = vst [vmem:[#allocation2 + $0x160] sm:$0xff] %v1759
        %1812 = vst [vmem:[#allocation2 + $0x168] sm:$0xff] %v1761
        %1813 = vst [vmem:[#allocation2 + $0x170] sm:$0xff] %v1763
        %1814 = vst [vmem:[#allocation2 + $0x178] sm:$0xff] %v1765
        %v1815 = vld [vmem:[#allocation2] sm:$0xff]
        %v1816 = vld [vmem:[#allocation2 + $0x10] sm:$0xff]
        %v1817 = vld [vmem:[#allocation2 + $0x28] sm:$0xff]
        %v1818 = vld [vmem:[#allocation2 + $0x38] sm:$0xff]
        %v1819 = vadd.f32 %v1815, %v1817
        %v1820 = vadd.f32 %v1816, %v1818
        %v1821 = vld [vmem:[#allocation2 + $0x20] sm:$0xff]
        %v1822 = vld [vmem:[#allocation2 + $0x30] sm:$0xff]
        %v1823 = vld [vmem:[#allocation2 + $0x48] sm:$0xff]
        %v1824 = vld [vmem:[#allocation2 + $0x58] sm:$0xff]
        %v1825 = vadd.f32 %v1821, %v1823
        %v1826 = vadd.f32 %v1822, %v1824
        %v1827 = vmax.f32 %v1819, %v1825
        %v1828 = vmax.f32 %v1820, %v1826
        %v1829 = vld [vmem:[#allocation2 + $0x40] sm:$0xff]
        %v1830 = vld [vmem:[#allocation2 + $0x50] sm:$0xff]
        %v1831 = vld [vmem:[#allocation2 + $0x68] sm:$0xff]
        %v1832 = vld [vmem:[#allocation2 + $0x78] sm:$0xff]
        %v1833 = vadd.f32 %v1829, %v1831
        %v1834 = vadd.f32 %v1830, %v1832
        %v1835 = vmax.f32 %v1827, %v1833
        %v1836 = vmax.f32 %v1828, %v1834
        %v1837 = vld [vmem:[#allocation2 + $0x60] sm:$0xff]
        %v1838 = vld [vmem:[#allocation2 + $0x70] sm:$0xff]
        %v1839 = vld [vmem:[#allocation2 + $0x88] sm:$0xff]
        %v1840 = vld [vmem:[#allocation2 + $0x98] sm:$0xff]
        %v1841 = vadd.f32 %v1837, %v1839
        %v1842 = vadd.f32 %v1838, %v1840
        %v1843 = vmax.f32 %v1835, %v1841
        %v1844 = vmax.f32 %v1836, %v1842
        %v1845 = vld [vmem:[#allocation2 + $0x80] sm:$0xff]
        %v1846 = vld [vmem:[#allocation2 + $0x90] sm:$0xff]
        %v1847 = vld [vmem:[#allocation2 + $0xa8] sm:$0xff]
        %v1848 = vld [vmem:[#allocation2 + $0xb8] sm:$0xff]
        %v1849 = vadd.f32 %v1845, %v1847
        %v1850 = vadd.f32 %v1846, %v1848
        %v1851 = vmax.f32 %v1843, %v1849
        %v1852 = vmax.f32 %v1844, %v1850
        %v1853 = vld [vmem:[#allocation2 + $0xa0] sm:$0xff]
        %v1854 = vld [vmem:[#allocation2 + $0xb0] sm:$0xff]
        %v1855 = vld [vmem:[#allocation2 + $0xc8] sm:$0xff]
        %v1856 = vld [vmem:[#allocation2 + $0xd8] sm:$0xff]
        %v1857 = vadd.f32 %v1853, %v1855
        %v1858 = vadd.f32 %v1854, %v1856
        %v1859 = vmax.f32 %v1851, %v1857
        %v1860 = vmax.f32 %v1852, %v1858
        %v1861 = vld [vmem:[#allocation2 + $0xc0] sm:$0xff]
        %v1862 = vld [vmem:[#allocation2 + $0xd0] sm:$0xff]
        %v1863 = vld [vmem:[#allocation2 + $0xe8] sm:$0xff]
        %v1864 = vld [vmem:[#allocation2 + $0xf8] sm:$0xff]
        %v1865 = vadd.f32 %v1861, %v1863
        %v1866 = vadd.f32 %v1862, %v1864
        %v1867 = vmax.f32 %v1859, %v1865
        %v1868 = vmax.f32 %v1860, %v1866
        %v1869 = vld [vmem:[#allocation2 + $0xe0] sm:$0xff]
        %v1870 = vld [vmem:[#allocation2 + $0xf0] sm:$0xff]
        %v1871 = vld [vmem:[#allocation2 + $0x108] sm:$0xff]
        %v1872 = vld [vmem:[#allocation2 + $0x118] sm:$0xff]
        %v1873 = vadd.f32 %v1869, %v1871
        %v1874 = vadd.f32 %v1870, %v1872
        %v1875 = vmax.f32 %v1867, %v1873
        %v1876 = vmax.f32 %v1868, %v1874
        %v1877 = vld [vmem:[#allocation2 + $0x100] sm:$0xff]
        %v1878 = vld [vmem:[#allocation2 + $0x110] sm:$0xff]
        %v1879 = vld [vmem:[#allocation2 + $0x128] sm:$0xff]
        %v1880 = vld [vmem:[#allocation2 + $0x138] sm:$0xff]
        %v1881 = vadd.f32 %v1877, %v1879
        %v1882 = vadd.f32 %v1878, %v1880
        %v1883 = vmax.f32 %v1875, %v1881
        %v1884 = vmax.f32 %v1876, %v1882
        %v1885 = vld [vmem:[#allocation2 + $0x120] sm:$0xff]
        %v1886 = vld [vmem:[#allocation2 + $0x130] sm:$0xff]
        %v1887 = vld [vmem:[#allocation2 + $0x148] sm:$0xff]
        %v1888 = vld [vmem:[#allocation2 + $0x158] sm:$0xff]
        %v1889 = vadd.f32 %v1885, %v1887
        %v1890 = vadd.f32 %v1886, %v1888
        %v1891 = vmax.f32 %v1883, %v1889
        %v1892 = vmax.f32 %v1884, %v1890
        %v1893 = vld [vmem:[#allocation2 + $0x140] sm:$0xff]
        %v1894 = vld [vmem:[#allocation2 + $0x150] sm:$0xff]
        %v1895 = vld [vmem:[#allocation2 + $0x168] sm:$0xff]
        %v1896 = vld [vmem:[#allocation2 + $0x178] sm:$0xff]
        %v1897 = vadd.f32 %v1893, %v1895
        %v1898 = vadd.f32 %v1894, %v1896
        %v1899 = vmax.f32 %v1891, %v1897
        %v1900 = vmax.f32 %v1892, %v1898
        %v1901 = vld [vmem:[%s2] sm:$0x1]
        %v1903 = vlaneseq
        %v1904 = vshrl.u32 %v1903, 7
        %v1905 = vsub.s32 0, %v1904
        %v1906 = vrot.slane %v1901, %v1905
        %v1908 = vadd.f32 %v1899, %v1906
        %v1909 = vadd.f32 %v1900, %v1906
        %v1910 = vmax.f32 %v1908, 0.0
        %v1911 = vmax.f32 %v1909, 0.0
        %v1912 = vld [vmem:[#allocation8] sm:$0xff]
        %v1913 = vld [vmem:[#allocation8 + $0x8] sm:$0xff]
        %v1914 = vld [vmem:[#allocation8 + $0x10] sm:$0xff]
        %v1915 = vld [vmem:[#allocation8 + $0x18] sm:$0xff]
        %v1916 = vld [vmem:[#allocation8 + $0x20] sm:$0xff]
        %v1917 = vld [vmem:[#allocation8 + $0x28] sm:$0xff]
        %v1918 = vld [vmem:[#allocation8 + $0x30] sm:$0xff]
        %v1919 = vld [vmem:[#allocation8 + $0x38] sm:$0xff]
        %v1920 = vld [vmem:[#allocation8 + $0x40] sm:$0xff]
        %v1921 = vld [vmem:[#allocation8 + $0x48] sm:$0xff]
        %v1922 = vld [vmem:[#allocation8 + $0x50] sm:$0xff]
        %v1923 = vld [vmem:[#allocation8 + $0x58] sm:$0xff]
        %v1924 = vld [vmem:[#allocation8 + $0x60] sm:$0xff]
        %v1925 = vld [vmem:[#allocation8 + $0x68] sm:$0xff]
        %v1926 = vld [vmem:[#allocation8 + $0x70] sm:$0xff]
        %v1927 = vld [vmem:[#allocation8 + $0x78] sm:$0xff]
        %v1928 = vld [vmem:[%s4] sm:$0x1]
        %v1930 = vlaneseq
        %v1931 = vshrl.u32 %v1930, 7
        %v1932 = vsub.s32 0, %v1931
        %v1933 = vrot.slane %v1928, %v1932
        %1935 = vmatprep.subr.mxu0 0.0
        %1936 = vmatpush1.msra.mxu0 %v1927
        %1937 = vmatprep.subr.mxu0 0.0
        %1938 = vmatpush1.msra.mxu0 %v1926
        %1939 = vmatprep.subr.mxu0 0.0
        %1940 = vmatpush1.msra.mxu0 %v1925
        %1941 = vmatprep.subr.mxu0 0.0
        %1942 = vmatpush1.msra.mxu0 %v1924
        %1943 = vmatprep.subr.mxu0 0.0
        %1944 = vmatpush1.msra.mxu0 %v1923
        %1945 = vmatprep.subr.mxu0 0.0
        %1946 = vmatpush1.msra.mxu0 %v1922
        %1947 = vmatprep.subr.mxu0 0.0
        %1948 = vmatpush1.msra.mxu0 %v1921
        %1949 = vmatprep.subr.mxu0 0.0
        %1950 = vmatpush1.msra.mxu0 %v1920
        %1951 = vmatprep.subr.mxu0 0.0
        %1952 = vmatpush1.msra.mxu0 %v1919
        %1953 = vmatprep.subr.mxu0 0.0
        %1954 = vmatpush1.msra.mxu0 %v1918
        %1955 = vmatprep.subr.mxu0 0.0
        %1956 = vmatpush1.msra.mxu0 %v1917
        %1957 = vmatprep.subr.mxu0 0.0
        %1958 = vmatpush1.msra.mxu0 %v1916
        %1959 = vmatprep.subr.mxu0 0.0
        %1960 = vmatpush1.msra.mxu0 %v1915
        %1961 = vmatprep.subr.mxu0 0.0
        %1962 = vmatpush1.msra.mxu0 %v1914
        %1963 = vmatprep.subr.mxu0 0.0
        %1964 = vmatpush1.msra.mxu0 %v1913
        %1965 = vmatprep.subr.mxu0 0.0
        %1966 = vmatpush1.msra.mxu0 %v1912
        %1967 = vmatprep.subr.mxu0 0.0
        %1968 = vmatpush2.msra.mxu0 0.0
        %1969 = vmatprep.subr.mxu0 0.0
        %1970 = vmatpush2.msra.mxu0 0.0
        %1971 = vmatprep.subr.mxu0 0.0
        %1972 = vmatpush2.msra.mxu0 0.0
        %1973 = vmatprep.subr.mxu0 0.0
        %1974 = vmatpush2.msra.mxu0 0.0
        %1975 = vmatprep.subr.mxu0 0.0
        %1976 = vmatpush2.msra.mxu0 0.0
        %1977 = vmatprep.subr.mxu0 0.0
        %1978 = vmatpush2.msra.mxu0 0.0
        %1979 = vmatprep.subr.mxu0 0.0
        %1980 = vmatpush2.msra.mxu0 0.0
        %1981 = vmatprep.subr.mxu0 0.0
        %1982 = vmatpush2.msra.mxu0 0.0
        %1983 = vmatprep.subr.mxu0 0.0
        %1984 = vmatpush2.msra.mxu0 0.0
        %1985 = vmatprep.subr.mxu0 0.0
        %1986 = vmatpush2.msra.mxu0 0.0
        %1987 = vmatprep.subr.mxu0 0.0
        %1988 = vmatpush2.msra.mxu0 0.0
        %1989 = vmatprep.subr.mxu0 0.0
        %1990 = vmatpush2.msra.mxu0 0.0
        %1991 = vmatprep.subr.mxu0 0.0
        %1992 = vmatpush2.msra.mxu0 0.0
        %1993 = vmatprep.subr.mxu0 0.0
        %1994 = vmatpush2.msra.mxu0 0.0
        %1995 = vmatprep.subr.mxu0 0.0
        %1996 = vmatpush2.msra.mxu0 0.0
        %1997 = vmatprep.subr.mxu0 0.0
        %1998 = vmatpush2.msra.mxu0 0.0
        %1999 = vmatprep.mubr.f32.mxu0 0.0
        %2000 = vmatmul.mubr.f32.gmra.mxu0 %v1910
        %v2001 = vpop.f32.mrf.mxu0
        %v2002 = vadd.f32 %v1933, %v2001
        %v2003 = vpop.f32.mrf.mxu0
        %2004 = vmatprep.mubr.f32.mxu0 0.0
        %2005 = vmatmul.mubr.f32.gmra.mxu0 %v1911
        %v2006 = vpop.f32.mrf.mxu0
        %v2007 = vadd.f32 %v1933, %v2006
        %v2008 = vpop.f32.mrf.mxu0
        %2009 = vdwg.mxu0
        %2010 = vmax.xlane.f32.xlu0 %v2002
        %v2011 = vpop.xlane.xlu0 %2010
        %2012 = vmax.xlane.f32.xlu0 %v2007
        %v2013 = vpop.xlane.xlu0 %2012
        %v2014 = vsub.f32 %v2002, %v2011
        %v2015 = vsub.f32 %v2007, %v2013
        %v2016 = vmul.f32 %v2014, 1.442695
        %v2017 = vpow.pop %v2016
        %v2018 = vmul.f32 %v2015, 1.442695
        %v2019 = vpow.pop %v2018
        %2020 = vadd.xlane.f32.xlu0 %v2017
        %v2021 = vpop.xlane.xlu0 %2020
        %2022 = vadd.xlane.f32.xlu0 %v2019
        %v2023 = vpop.xlane.xlu0 %2022
        %v2024 = vrcp.pop %v2021
        %v2025 = vmul.f32 %v2017, %v2024
        %v2026 = vrcp.pop %v2023
        %v2027 = vmul.f32 %v2019, %v2026
        %2028 = vst [vmem:[%s297] sm:$0xff] %v2025
        %2029 = vst [vmem:[%s297 + $0x8] sm:$0xff] %v2027
        %s2030 = sand.u32 %s141, 1
        %s2031 = scalar_lea.sflag [#allocation5], %s2030
        %s2032 = sand.u32 %s141, 1
        %s2033 = smul.addr %s2032, 16
        %s2034 = scalar_lea.vmem [#allocation9], %s2033
        // Predicated region
        $region53: #{tpu_custom_call.1} parent=39 // pred_check
          %p2035 = pneg %p151
        $region54: #{tpu_custom_call.1} parent=39 // pred_check_branch
          %2037 = sbr.rel (%p2035) target = $region56
        $region55: #{tpu_custom_call.1} parent=39 // pred_region
          %s2038 = smul.u32 2, %s23
          %s2040 = ssub.s32 256, 256
          %2041 = vsyncadd %s2031, %s2040
          %s2042 = smul.addr %s2038, 128
          %s2043 = scalar_lea.hbm %s5, %s2042
          %s2044 = sshll.u32 %s2034, 4
          %s2045 = int_to_ptr.vmem [resolvable:$true] %s2044
          %2050 = dma.vmem_to_hbm [thread:$0]  %s2045, 256, %s2043, %s2031, 128, 128, 8
        $region56: #{tpu_custom_call.1} parent=39 // pred_fallthru
          _
      $region40: #{tpu_custom_call.1} parent=5 // pred_fallthru
        _
      %p2051 = scmp.le.s32.totalorder 2, %s18
      // Predicated region
      $region57: #{tpu_custom_call.1} parent=5 // pred_check
        %p2052 = pneg %p2051
      $region58: #{tpu_custom_call.1} parent=5 // pred_check_branch
        %2054 = sbr.rel (%p2052) target = $region60
      $region59: #{tpu_custom_call.1} parent=5 // pred_region
        %s2055 = ssub.s32 %s18, 2
        // Predicated region
        $region61: #{tpu_custom_call.1} parent=59 // pred_check
          %p2056 = pneg %p157
        $region62: #{tpu_custom_call.1} parent=59 // pred_check_branch
          %2058 = sbr.rel (%p2056) target = $region64
        $region63: #{tpu_custom_call.1} parent=59 // pred_region
          %s2059 = sand.u32 %s142, 1
          %s2060 = scalar_lea.sflag [#allocation5], %s2059
          %s2061 = sand.u32 %s142, 1
          %s2062 = smul.addr %s2061, 16
          %s2063 = scalar_lea.vmem [#allocation9], %s2062
          %2064 = dma.done %s2060, 256
        $region64: #{tpu_custom_call.1} parent=59 // pred_fallthru
          _
      $region60: #{tpu_custom_call.1} parent=5 // pred_fallthru
        _
    $region6: #{tpu_custom_call.1} parent=1 // loop_footer
      %s22 = sadd.s32 1, %s18
    $region7: #{tpu_custom_call.1} parent=1 // loop_footer_branch
      %17 = sbr.rel target = $region3
    $region8: #{tpu_custom_call.1} parent=1 // loop_exit
      _
    %2065 = vsyncpa [#allocation4], 1
    %s2066 = scalar_lea.sflag [#allocation4], 1
    %2067 = vsyncpa %s2066, 1
    %2068 = vsyncpa [#allocation7], 1
    %2069 = vsyncpa [#allocation5], 1
    %s2070 = scalar_lea.sflag [#allocation5], 1
    %2071 = vsyncpa %s2070, 1

</llo_original>
